<compile_context>
chip_gen: v7x
topology: tpu7x:2x2x1
jax: 0.10.0
libtpu: 0.0.40
codegen_flags: <defaults>
</compile_context>

<pallas_src>
import functools

import jax
import jax.numpy as jnp
from jax.experimental import pallas as pl
from jax.experimental.pallas import tpu as pltpu


LANE = 128     # lane tile
SUBLANE = 8    # f32 sublane tile: batch is padded to a multiple of this


def make_lstm_seq_kernel(hidden_size: int, chunk: int, seq_len: int, padded_len: int):
    """Per-chunk recurrent kernel body.

    Refs (shapes as seen in-kernel):
      xproj_ref : (TC, Bp, G4) bf16  precomputed x_t @ Wx + b (dense gate packing)
      wh_ref    : (H, G4)      bf16  recurrent weights, VMEM-resident all chunks
      h0_ref    : (Bp, H)      f32   initial hidden state
      c0_ref    : (Bp, H)      f32   initial cell state
      out_ref   : (TC, Bp, H)  f32   raw h_t per step (log-softmax applied later)
      h_ref     : (Bp, H)      f32   carried hidden (VMEM-resident output block)
      c_ref     : (Bp, H)      f32   carried cell   (VMEM-resident output block)
    """
    H = hidden_size
    needs_tail_guard = padded_len != seq_len

    def kernel(xproj_ref, wh_ref, h0_ref, c0_ref, out_ref, h_ref, c_ref):
        tchunk = pl.program_id(0)

        @pl.when(tchunk == 0)
        def _init():
            h_ref[...] = h0_ref[...]
            c_ref[...] = c0_ref[...]

        wh = wh_ref[...]  # bf16 (H, G4), loaded once per chunk

        def step(s, carry):
            h = h_ref[...]
            c = c_ref[...]
            # Only the truly recurrent (Bp,H) @ (H,G4) dot runs per step; the
            # input projection was hoisted out of the recurrence.
            z = xproj_ref[s].astype(jnp.float32) + jnp.dot(
                h.astype(jnp.bfloat16), wh, preferred_element_type=jnp.float32)

            # Gate order [f, i, C_, o], densely packed along the lane axis.
            f = jax.nn.sigmoid(z[:, 0 * H:1 * H])
            i = jax.nn.sigmoid(z[:, 1 * H:2 * H])
            g = jnp.tanh(z[:, 2 * H:3 * H])
            o = jax.nn.sigmoid(z[:, 3 * H:4 * H])

            c_new = f * c + i * g
            h_new = o * jnp.tanh(c_new)

            if needs_tail_guard:
                # Steps past the real sequence length keep the carry frozen.
                valid = (tchunk * chunk + s) < seq_len
                h_new = jnp.where(valid, h_new, h)
                c_new = jnp.where(valid, c_new, c)

            h_ref[...] = h_new
            c_ref[...] = c_new
            out_ref[s] = h_new
            return carry

        jax.lax.fori_loop(0, chunk, step, 0, unroll=True)

    return kernel


def log_softmax_kernel(h_ref, out_ref):
    """Fully parallel post-pass: LogSoftmax(dim=-1) over raw per-step h."""
    x = h_ref[...]                                       # (TC, Bp, H) f32
    m = jnp.max(x, axis=-1, keepdims=True)
    ex = jnp.exp(x - m)
    lse = jnp.log(jnp.sum(ex, axis=-1, keepdims=True))
    out_ref[...] = x - m - lse


def lstm_forward_sequence(x_seq, h0, c0, w_cat, b_cat, *, chunk=32):
    """Applies the PyTorch module's forward once per time step, fused over T.

    x_seq : (T, B, input_size)
    h0, c0: (B, hidden_size)
    w_cat : (input_size + hidden_size, 4*hidden_size), gate order [f, i, C_, o]
    b_cat : (1, 4*hidden_size)

    Returns (per-step log-softmax outputs (T, B, H), hidden_T, cell_T).
    """
    T, B, I = x_seq.shape
    H = h0.shape[1]

    G4 = ((4 * H + LANE - 1) // LANE) * LANE            # dense gate packing
    Bp = ((B + SUBLANE - 1) // SUBLANE) * SUBLANE
    TC = min(chunk, T)
    nchunks = pl.cdiv(T, TC)
    Tp = nchunks * TC

    f32, bf16 = jnp.float32, jnp.bfloat16

    w_x = w_cat[:I].astype(f32)                          # (I, 4H)
    w_h = w_cat[I:].astype(f32)                          # (H, 4H)

    def pack_gate_cols(w):
        # Gates stay densely packed in the first 4H lanes; tail lanes are 0.
        return jnp.zeros((w.shape[0], G4), f32).at[:, :4 * H].set(w)

    wx_p = pack_gate_cols(w_x).astype(bf16)              # (I, G4) bf16
    wh_p = pack_gate_cols(w_h).astype(bf16)              # (H, G4) bf16
    b_p = jnp.zeros((1, G4), f32).at[:, :4 * H].set(b_cat.reshape(1, -1).astype(f32))

    x_p = jnp.zeros((Tp, Bp, I), bf16).at[:T, :B, :].set(x_seq.astype(bf16))
    h0_p = jnp.zeros((Bp, H), f32).at[:B].set(h0.astype(f32))
    c0_p = jnp.zeros((Bp, H), f32).at[:B].set(c0.astype(f32))

    # Hoisted input projection: one large bf16 matmul with f32 accumulation.
    xproj = (jnp.einsum("tbi,ij->tbj", x_p, wx_p,
                        preferred_element_type=f32) + b_p).astype(bf16)

    raw_h, h_T, c_T = pl.pallas_call(
        make_lstm_seq_kernel(H, TC, T, Tp),
        out_shape=(
            jax.ShapeDtypeStruct((Tp, Bp, H), f32),      # raw per-step hidden
            jax.ShapeDtypeStruct((Bp, H), f32),          # final hidden
            jax.ShapeDtypeStruct((Bp, H), f32),          # final cell
        ),
        grid=(nchunks,),
        in_specs=[
            pl.BlockSpec((TC, Bp, G4), lambda t: (t, 0, 0)),  # xproj chunk t
            pl.BlockSpec((H, G4), lambda t: (0, 0)),          # Wh resident
            pl.BlockSpec((Bp, H), lambda t: (0, 0)),          # h0 resident
            pl.BlockSpec((Bp, H), lambda t: (0, 0)),          # c0 resident
        ],
        out_specs=(
            pl.BlockSpec((TC, Bp, H), lambda t: (t, 0, 0)),
            pl.BlockSpec((Bp, H), lambda t: (0, 0)),          # VMEM-resident h carry
            pl.BlockSpec((Bp, H), lambda t: (0, 0)),          # VMEM-resident c carry
        ),
        compiler_params=pltpu.CompilerParams(
            dimension_semantics=("arbitrary",),               # time is sequential
            vmem_limit_bytes=64 * 1024 * 1024,
        ),
    )(xproj, wh_p, h0_p, c0_p)

    # Log-softmax off the serial path: embarrassingly parallel over time chunks.
    out_ls = pl.pallas_call(
        log_softmax_kernel,
        out_shape=jax.ShapeDtypeStruct((Tp, Bp, H), f32),
        grid=(nchunks,),
        in_specs=[pl.BlockSpec((TC, Bp, H), lambda t: (t, 0, 0))],
        out_specs=pl.BlockSpec((TC, Bp, H), lambda t: (t, 0, 0)),
        compiler_params=pltpu.CompilerParams(
            dimension_semantics=("parallel",),
        ),
    )(raw_h)

    return out_ls[:T, :B, :], h_T[:B], c_T[:B]


def init_params(key, input_size, hidden_size):
    """Deterministic params mimicking nn.Linear default init (uniform +-1/sqrt(fan_in)).

    Gate order [f, i, C_, o], fused as W (concat, 4H) and bias (1, 4H)."""
    concat = input_size + hidden_size
    bound = 1.0 / jnp.sqrt(jnp.float32(concat))
    keys = jax.random.split(key, 8)
    ws, bs = [], []
    for g in range(4):
        w = jax.random.uniform(keys[2 * g], (hidden_size, concat),
                               minval=-bound, maxval=bound, dtype=jnp.float32)
        b = jax.random.uniform(keys[2 * g + 1], (hidden_size,),
                               minval=-bound, maxval=bound, dtype=jnp.float32)
        ws.append(w.T)        # (concat, hidden) so kernel does x @ W
        bs.append(b)
    w_cat = jnp.concatenate(ws, axis=1)            # (concat, 4*hidden)
    b_cat = jnp.concatenate(bs)[None, :]           # (1, 4*hidden)
    return w_cat, b_cat


def reference_sequence(x_seq, h0, c0, w_cat, b_cat):
    """Pure-JAX f32 reference: the original per-step module forward, scanned over T."""
    H = h0.shape[1]

    def step(carry, x_t):
        h, c = carry
        combined = jnp.concatenate([x_t, h], axis=1)
        z = jnp.dot(combined, w_cat, precision=jax.lax.Precision.HIGHEST) + b_cat
        f = jax.nn.sigmoid(z[:, 0 * H:1 * H])
        i = jax.nn.sigmoid(z[:, 1 * H:2 * H])
        g = jnp.tanh(z[:, 2 * H:3 * H])
        o = jax.nn.sigmoid(z[:, 3 * H:4 * H])
        c_new = f * c + i * g
        h_new = o * jnp.tanh(c_new)
        out = jax.nn.log_softmax(h_new, axis=1)
        return (h_new, c_new), out

    (h_T, c_T), outs = jax.lax.scan(step, (h0, c0), x_seq)
    return outs, h_T, c_T


if __name__ == "__main__":
    input_size = 16
    hidden_size = 32
    batch = 2
    seq_len = 8

    key = jax.random.PRNGKey(0)
    k_x, k_p = jax.random.split(key, 2)

    x_seq = jax.random.normal(k_x, (seq_len, batch, input_size), dtype=jnp.float32)
    h0 = jnp.zeros((batch, hidden_size), jnp.float32)   # matches module.initHidden()
    c0 = jnp.zeros((batch, hidden_size), jnp.float32)
    w_cat, b_cat = init_params(k_p, input_size, hidden_size)

    fwd = jax.jit(functools.partial(lstm_forward_sequence, chunk=32))
    out_seq, h_T, c_T = fwd(x_seq, h0, c0, w_cat, b_cat)
    jax.block_until_ready((out_seq, h_T, c_T))

    # Correctness check against the pure-JAX f32 per-step reference.
    # Tolerance reflects bf16 MXU operands (kernel) vs f32 HIGHEST (reference).
    ro, rh, rc = reference_sequence(x_seq, h0, c0, w_cat, b_cat)
    assert jnp.allclose(out_seq, ro, atol=5e-2), "output mismatch"
    assert jnp.allclose(h_T, rh, atol=5e-2), "hidden mismatch"
    assert jnp.allclose(c_T, rc, atol=5e-2), "cell mismatch"

    print("KERNEL_OK")
</pallas_src>

<mosaic_0001>
module attributes {stable_mosaic.version = 11 : i64} {
  func.func @log_softmax_kernel(%arg0: i32, %arg1: memref<8x8x32xf32, #tpu.memory_space<vmem>>, %arg2: memref<8x8x32xf32, #tpu.memory_space<vmem>>) attributes {dimension_semantics = [#tpu.dimension_semantics<parallel>], iteration_bounds = array<i64: 1>, scalar_prefetch = 0 : i64, scratch_operands = 0 : i64, tpu.core_type = #tpu.core_type<tc>, window_params = [{transform_indices = @transform_0, window_bounds = array<i64: 8, 8, 32>}, {transform_indices = @transform_1, window_bounds = array<i64: 8, 8, 32>}]} {
    %c0 = arith.constant 0 : index
    %c0_0 = arith.constant 0 : index
    %c0_1 = arith.constant 0 : index
    %0 = vector.load %arg1[%c0, %c0_0, %c0_1] : memref<8x8x32xf32, #tpu.memory_space<vmem>>, vector<8x8x32xf32>
    %cst = arith.constant dense<0xFF800000> : vector<8x8xf32>
    %1 = vector.multi_reduction <maximumf>, %0, %cst [2] : vector<8x8x32xf32> to vector<8x8xf32>
    %2 = vector.shape_cast %1 : vector<8x8xf32> to vector<8x8x1xf32>
    %3 = vector.broadcast %2 : vector<8x8x1xf32> to vector<8x8x32xf32>
    %4 = arith.subf %0, %3 : vector<8x8x32xf32>
    %5 = math.exp %4 : vector<8x8x32xf32>
    %cst_2 = arith.constant dense<0.000000e+00> : vector<8x8xf32>
    %6 = vector.multi_reduction <add>, %5, %cst_2 [2] : vector<8x8x32xf32> to vector<8x8xf32>
    %7 = vector.shape_cast %6 : vector<8x8xf32> to vector<8x8x1xf32>
    %8 = math.log %7 : vector<8x8x1xf32>
    %9 = vector.broadcast %2 : vector<8x8x1xf32> to vector<8x8x32xf32>
    %10 = arith.subf %0, %9 : vector<8x8x32xf32>
    %11 = vector.broadcast %8 : vector<8x8x1xf32> to vector<8x8x32xf32>
    %12 = arith.subf %10, %11 : vector<8x8x32xf32>
    %c0_3 = arith.constant 0 : index
    %c0_4 = arith.constant 0 : index
    %c0_5 = arith.constant 0 : index
    %13 = vector.load %arg2[%c0_3, %c0_4, %c0_5] : memref<8x8x32xf32, #tpu.memory_space<vmem>>, vector<8x8x32xf32>
    tpu.vector_store %arg2[%c0_3, %c0_4, %c0_5], %12 {strides = array<i32>} : memref<8x8x32xf32, #tpu.memory_space<vmem>>, vector<8x8x32xf32>,
    return
  }
  func.func @transform_0(%arg0: i32) -> (i32, i32, i32) {
    %c0_i32 = arith.constant 0 : i32
    %c0_i32_0 = arith.constant 0 : i32
    %c0_i32_1 = arith.constant 0 : i32
    return %arg0, %c0_i32, %c0_i32_0 : i32, i32, i32
  }
  func.func @transform_1(%arg0: i32) -> (i32, i32, i32) {
    %c0_i32 = arith.constant 0 : i32
    %c0_i32_0 = arith.constant 0 : i32
    %c0_i32_1 = arith.constant 0 : i32
    return %arg0, %c0_i32, %c0_i32_0 : i32, i32, i32
  }
}

module attributes {stable_mosaic.version = 11 : i64} {
  func.func @kernel(%arg0: i32, %arg1: memref<8x8x128xbf16, #tpu.memory_space<vmem>>, %arg2: memref<32x128xbf16, #tpu.memory_space<vmem>>, %arg3: memref<8x32xf32, #tpu.memory_space<vmem>>, %arg4: memref<8x32xf32, #tpu.memory_space<vmem>>, %arg5: memref<8x8x32xf32, #tpu.memory_space<vmem>>, %arg6: memref<8x32xf32, #tpu.memory_space<vmem>>, %arg7: memref<8x32xf32, #tpu.memory_space<vmem>>) attributes {dimension_semantics = [#tpu.dimension_semantics<arbitrary>], iteration_bounds = array<i64: 1>, scalar_prefetch = 0 : i64, scratch_operands = 0 : i64, tpu.core_type = #tpu.core_type<tc>, window_params = [{transform_indices = @transform_0, window_bounds = array<i64: 8, 8, 128>}, {pipeline_mode = #tpu.pipeline_mode<synchronous>, transform_indices = @transform_1, window_bounds = array<i64: 32, 128>}, {pipeline_mode = #tpu.pipeline_mode<synchronous>, transform_indices = @transform_2, window_bounds = array<i64: 8, 32>}, {pipeline_mode = #tpu.pipeline_mode<synchronous>, transform_indices = @transform_3, window_bounds = array<i64: 8, 32>}, {transform_indices = @transform_4, window_bounds = array<i64: 8, 8, 32>}, {pipeline_mode = #tpu.pipeline_mode<synchronous>, transform_indices = @transform_5, window_bounds = array<i64: 8, 32>}, {pipeline_mode = #tpu.pipeline_mode<synchronous>, transform_indices = @transform_6, window_bounds = array<i64: 8, 32>}]} {
    %c0_i32 = arith.constant 0 : i32
    %0 = arith.cmpi eq, %arg0, %c0_i32 : i32
    %1 = arith.extui %0 : i1 to i32
    %c0_i32_0 = arith.constant 0 : i32
    %2 = arith.cmpi ne, %1, %c0_i32_0 : i32
    scf.if %2 {
      %c0_130 = arith.constant 0 : index
      %c0_131 = arith.constant 0 : index
      %324 = vector.load %arg3[%c0_130, %c0_131] : memref<8x32xf32, #tpu.memory_space<vmem>>, vector<8x32xf32>
      %c0_132 = arith.constant 0 : index
      %c0_133 = arith.constant 0 : index
      %325 = vector.load %arg6[%c0_132, %c0_133] : memref<8x32xf32, #tpu.memory_space<vmem>>, vector<8x32xf32>
      tpu.vector_store %arg6[%c0_132, %c0_133], %324 {strides = array<i32>} : memref<8x32xf32, #tpu.memory_space<vmem>>, vector<8x32xf32>,
      %c0_134 = arith.constant 0 : index
      %c0_135 = arith.constant 0 : index
      %326 = vector.load %arg4[%c0_134, %c0_135] : memref<8x32xf32, #tpu.memory_space<vmem>>, vector<8x32xf32>
      %c0_136 = arith.constant 0 : index
      %c0_137 = arith.constant 0 : index
      %327 = vector.load %arg7[%c0_136, %c0_137] : memref<8x32xf32, #tpu.memory_space<vmem>>, vector<8x32xf32>
      tpu.vector_store %arg7[%c0_136, %c0_137], %326 {strides = array<i32>} : memref<8x32xf32, #tpu.memory_space<vmem>>, vector<8x32xf32>,
    } else {
    }
    %c0 = arith.constant 0 : index
    %c0_1 = arith.constant 0 : index
    %3 = vector.load %arg2[%c0, %c0_1] : memref<32x128xbf16, #tpu.memory_space<vmem>>, vector<32x128xbf16>
    %c0_i32_2 = arith.constant 0 : i32
    %c0_3 = arith.constant 0 : index
    %c0_4 = arith.constant 0 : index
    %4 = vector.load %arg6[%c0_3, %c0_4] : memref<8x32xf32, #tpu.memory_space<vmem>>, vector<8x32xf32>
    %c0_5 = arith.constant 0 : index
    %c0_6 = arith.constant 0 : index
    %5 = vector.load %arg7[%c0_5, %c0_6] : memref<8x32xf32, #tpu.memory_space<vmem>>, vector<8x32xf32>
    %6 = arith.index_cast %c0_i32_2 : i32 to index
    %c0_7 = arith.constant 0 : index
    %c0_8 = arith.constant 0 : index
    %7 = vector.load %arg1[%6, %c0_7, %c0_8] : memref<8x8x128xbf16, #tpu.memory_space<vmem>>, vector<1x8x128xbf16>
    %8 = vector.shape_cast %7 : vector<1x8x128xbf16> to vector<8x128xbf16>
    %9 = arith.extf %8 : vector<8x128xbf16> to vector<8x128xf32>
    %10 = arith.truncf %4 : vector<8x32xf32> to vector<8x32xbf16>
    %cst = arith.constant dense<0.000000e+00> : vector<8x128xf32>
    %11 = tpu.matmul %10, %3, %cst {dimension_numbers = #tpu.dot_dimension_numbers<[1], [0], [0], [1], [0, 0, 1, 1], [], []>} : vector<8x32xbf16>, vector<32x128xbf16>, vector<8x128xf32> -> vector<8x128xf32>
    %12 = arith.addf %9, %11 : vector<8x128xf32>
    %13 = vector.extract_strided_slice %12 {offsets = [0, 0], sizes = [8, 32], strides = [1, 1]} : vector<8x128xf32> to vector<8x32xf32>
    %14 = arith.negf %13 : vector<8x32xf32>
    %15 = math.exp %14 : vector<8x32xf32>
    %cst_9 = arith.constant 1.000000e+00 : f32
    %16 = vector.broadcast %cst_9 : f32 to vector<8x32xf32>
    %17 = arith.addf %16, %15 : vector<8x32xf32>
    %18 = arith.divf %16, %17 : vector<8x32xf32>
    %19 = vector.extract_strided_slice %12 {offsets = [0, 32], sizes = [8, 32], strides = [1, 1]} : vector<8x128xf32> to vector<8x32xf32>
    %20 = arith.negf %19 : vector<8x32xf32>
    %21 = math.exp %20 : vector<8x32xf32>
    %cst_10 = arith.constant 1.000000e+00 : f32
    %22 = vector.broadcast %cst_10 : f32 to vector<8x32xf32>
    %23 = arith.addf %22, %21 : vector<8x32xf32>
    %24 = arith.divf %22, %23 : vector<8x32xf32>
    %25 = vector.extract_strided_slice %12 {offsets = [0, 64], sizes = [8, 32], strides = [1, 1]} : vector<8x128xf32> to vector<8x32xf32>
    %26 = math.tanh %25 : vector<8x32xf32>
    %27 = vector.extract_strided_slice %12 {offsets = [0, 96], sizes = [8, 32], strides = [1, 1]} : vector<8x128xf32> to vector<8x32xf32>
    %28 = arith.negf %27 : vector<8x32xf32>
    %29 = math.exp %28 : vector<8x32xf32>
    %cst_11 = arith.constant 1.000000e+00 : f32
    %30 = vector.broadcast %cst_11 : f32 to vector<8x32xf32>
    %31 = arith.addf %30, %29 : vector<8x32xf32>
    %32 = arith.divf %30, %31 : vector<8x32xf32>
    %33 = arith.mulf %18, %5 : vector<8x32xf32>
    %34 = arith.mulf %24, %26 : vector<8x32xf32>
    %35 = arith.addf %33, %34 : vector<8x32xf32>
    %36 = math.tanh %35 : vector<8x32xf32>
    %37 = arith.mulf %32, %36 : vector<8x32xf32>
    %c0_12 = arith.constant 0 : index
    %c0_13 = arith.constant 0 : index
    %38 = vector.load %arg6[%c0_12, %c0_13] : memref<8x32xf32, #tpu.memory_space<vmem>>, vector<8x32xf32>
    tpu.vector_store %arg6[%c0_12, %c0_13], %37 {strides = array<i32>} : memref<8x32xf32, #tpu.memory_space<vmem>>, vector<8x32xf32>,
    %c0_14 = arith.constant 0 : index
    %c0_15 = arith.constant 0 : index
    %39 = vector.load %arg7[%c0_14, %c0_15] : memref<8x32xf32, #tpu.memory_space<vmem>>, vector<8x32xf32>
    tpu.vector_store %arg7[%c0_14, %c0_15], %35 {strides = array<i32>} : memref<8x32xf32, #tpu.memory_space<vmem>>, vector<8x32xf32>,
    %40 = arith.index_cast %c0_i32_2 : i32 to index
    %c0_16 = arith.constant 0 : index
    %c0_17 = arith.constant 0 : index
    %41 = vector.load %arg5[%40, %c0_16, %c0_17] : memref<8x8x32xf32, #tpu.memory_space<vmem>>, vector<1x8x32xf32>
    %42 = vector.shape_cast %41 : vector<1x8x32xf32> to vector<8x32xf32>
    %43 = vector.shape_cast %37 : vector<8x32xf32> to vector<1x8x32xf32>
    tpu.vector_store %arg5[%40, %c0_16, %c0_17], %43 {strides = array<i32>} : memref<8x8x32xf32, #tpu.memory_space<vmem>>, vector<1x8x32xf32>,
    %c1_i32 = arith.constant 1 : i32
    %c0_18 = arith.constant 0 : index
    %c0_19 = arith.constant 0 : index
    %44 = vector.load %arg6[%c0_18, %c0_19] : memref<8x32xf32, #tpu.memory_space<vmem>>, vector<8x32xf32>
    %c0_20 = arith.constant 0 : index
    %c0_21 = arith.constant 0 : index
    %45 = vector.load %arg7[%c0_20, %c0_21] : memref<8x32xf32, #tpu.memory_space<vmem>>, vector<8x32xf32>
    %46 = arith.index_cast %c1_i32 : i32 to index
    %c0_22 = arith.constant 0 : index
    %c0_23 = arith.constant 0 : index
    %47 = vector.load %arg1[%46, %c0_22, %c0_23] : memref<8x8x128xbf16, #tpu.memory_space<vmem>>, vector<1x8x128xbf16>
    %48 = vector.shape_cast %47 : vector<1x8x128xbf16> to vector<8x128xbf16>
    %49 = arith.extf %48 : vector<8x128xbf16> to vector<8x128xf32>
    %50 = arith.truncf %44 : vector<8x32xf32> to vector<8x32xbf16>
    %cst_24 = arith.constant dense<0.000000e+00> : vector<8x128xf32>
    %51 = tpu.matmul %50, %3, %cst_24 {dimension_numbers = #tpu.dot_dimension_numbers<[1], [0], [0], [1], [0, 0, 1, 1], [], []>} : vector<8x32xbf16>, vector<32x128xbf16>, vector<8x128xf32> -> vector<8x128xf32>
    %52 = arith.addf %49, %51 : vector<8x128xf32>
    %53 = vector.extract_strided_slice %52 {offsets = [0, 0], sizes = [8, 32], strides = [1, 1]} : vector<8x128xf32> to vector<8x32xf32>
    %54 = arith.negf %53 : vector<8x32xf32>
    %55 = math.exp %54 : vector<8x32xf32>
    %cst_25 = arith.constant 1.000000e+00 : f32
    %56 = vector.broadcast %cst_25 : f32 to vector<8x32xf32>
    %57 = arith.addf %56, %55 : vector<8x32xf32>
    %58 = arith.divf %56, %57 : vector<8x32xf32>
    %59 = vector.extract_strided_slice %52 {offsets = [0, 32], sizes = [8, 32], strides = [1, 1]} : vector<8x128xf32> to vector<8x32xf32>
    %60 = arith.negf %59 : vector<8x32xf32>
    %61 = math.exp %60 : vector<8x32xf32>
    %cst_26 = arith.constant 1.000000e+00 : f32
    %62 = vector.broadcast %cst_26 : f32 to vector<8x32xf32>
    %63 = arith.addf %62, %61 : vector<8x32xf32>
    %64 = arith.divf %62, %63 : vector<8x32xf32>
    %65 = vector.extract_strided_slice %52 {offsets = [0, 64], sizes = [8, 32], strides = [1, 1]} : vector<8x128xf32> to vector<8x32xf32>
    %66 = math.tanh %65 : vector<8x32xf32>
    %67 = vector.extract_strided_slice %52 {offsets = [0, 96], sizes = [8, 32], strides = [1, 1]} : vector<8x128xf32> to vector<8x32xf32>
    %68 = arith.negf %67 : vector<8x32xf32>
    %69 = math.exp %68 : vector<8x32xf32>
    %cst_27 = arith.constant 1.000000e+00 : f32
    %70 = vector.broadcast %cst_27 : f32 to vector<8x32xf32>
    %71 = arith.addf %70, %69 : vector<8x32xf32>
    %72 = arith.divf %70, %71 : vector<8x32xf32>
    %73 = arith.mulf %58, %45 : vector<8x32xf32>
    %74 = arith.mulf %64, %66 : vector<8x32xf32>
    %75 = arith.addf %73, %74 : vector<8x32xf32>
    %76 = math.tanh %75 : vector<8x32xf32>
    %77 = arith.mulf %72, %76 : vector<8x32xf32>
    %c0_28 = arith.constant 0 : index
    %c0_29 = arith.constant 0 : index
    %78 = vector.load %arg6[%c0_28, %c0_29] : memref<8x32xf32, #tpu.memory_space<vmem>>, vector<8x32xf32>
    tpu.vector_store %arg6[%c0_28, %c0_29], %77 {strides = array<i32>} : memref<8x32xf32, #tpu.memory_space<vmem>>, vector<8x32xf32>,
    %c0_30 = arith.constant 0 : index
    %c0_31 = arith.constant 0 : index
    %79 = vector.load %arg7[%c0_30, %c0_31] : memref<8x32xf32, #tpu.memory_space<vmem>>, vector<8x32xf32>
    tpu.vector_store %arg7[%c0_30, %c0_31], %75 {strides = array<i32>} : memref<8x32xf32, #tpu.memory_space<vmem>>, vector<8x32xf32>,
    %80 = arith.index_cast %c1_i32 : i32 to index
    %c0_32 = arith.constant 0 : index
    %c0_33 = arith.constant 0 : index
    %81 = vector.load %arg5[%80, %c0_32, %c0_33] : memref<8x8x32xf32, #tpu.memory_space<vmem>>, vector<1x8x32xf32>
    %82 = vector.shape_cast %81 : vector<1x8x32xf32> to vector<8x32xf32>
    %83 = vector.shape_cast %77 : vector<8x32xf32> to vector<1x8x32xf32>
    tpu.vector_store %arg5[%80, %c0_32, %c0_33], %83 {strides = array<i32>} : memref<8x8x32xf32, #tpu.memory_space<vmem>>, vector<1x8x32xf32>,
    %c2_i32 = arith.constant 2 : i32
    %c0_34 = arith.constant 0 : index
    %c0_35 = arith.constant 0 : index
    %84 = vector.load %arg6[%c0_34, %c0_35] : memref<8x32xf32, #tpu.memory_space<vmem>>, vector<8x32xf32>
    %c0_36 = arith.constant 0 : index
    %c0_37 = arith.constant 0 : index
    %85 = vector.load %arg7[%c0_36, %c0_37] : memref<8x32xf32, #tpu.memory_space<vmem>>, vector<8x32xf32>
    %86 = arith.index_cast %c2_i32 : i32 to index
    %c0_38 = arith.constant 0 : index
    %c0_39 = arith.constant 0 : index
    %87 = vector.load %arg1[%86, %c0_38, %c0_39] : memref<8x8x128xbf16, #tpu.memory_space<vmem>>, vector<1x8x128xbf16>
    %88 = vector.shape_cast %87 : vector<1x8x128xbf16> to vector<8x128xbf16>
    %89 = arith.extf %88 : vector<8x128xbf16> to vector<8x128xf32>
    %90 = arith.truncf %84 : vector<8x32xf32> to vector<8x32xbf16>
    %cst_40 = arith.constant dense<0.000000e+00> : vector<8x128xf32>
    %91 = tpu.matmul %90, %3, %cst_40 {dimension_numbers = #tpu.dot_dimension_numbers<[1], [0], [0], [1], [0, 0, 1, 1], [], []>} : vector<8x32xbf16>, vector<32x128xbf16>, vector<8x128xf32> -> vector<8x128xf32>
    %92 = arith.addf %89, %91 : vector<8x128xf32>
    %93 = vector.extract_strided_slice %92 {offsets = [0, 0], sizes = [8, 32], strides = [1, 1]} : vector<8x128xf32> to vector<8x32xf32>
    %94 = arith.negf %93 : vector<8x32xf32>
    %95 = math.exp %94 : vector<8x32xf32>
    %cst_41 = arith.constant 1.000000e+00 : f32
    %96 = vector.broadcast %cst_41 : f32 to vector<8x32xf32>
    %97 = arith.addf %96, %95 : vector<8x32xf32>
    %98 = arith.divf %96, %97 : vector<8x32xf32>
    %99 = vector.extract_strided_slice %92 {offsets = [0, 32], sizes = [8, 32], strides = [1, 1]} : vector<8x128xf32> to vector<8x32xf32>
    %100 = arith.negf %99 : vector<8x32xf32>
    %101 = math.exp %100 : vector<8x32xf32>
    %cst_42 = arith.constant 1.000000e+00 : f32
    %102 = vector.broadcast %cst_42 : f32 to vector<8x32xf32>
    %103 = arith.addf %102, %101 : vector<8x32xf32>
    %104 = arith.divf %102, %103 : vector<8x32xf32>
    %105 = vector.extract_strided_slice %92 {offsets = [0, 64], sizes = [8, 32], strides = [1, 1]} : vector<8x128xf32> to vector<8x32xf32>
    %106 = math.tanh %105 : vector<8x32xf32>
    %107 = vector.extract_strided_slice %92 {offsets = [0, 96], sizes = [8, 32], strides = [1, 1]} : vector<8x128xf32> to vector<8x32xf32>
    %108 = arith.negf %107 : vector<8x32xf32>
    %109 = math.exp %108 : vector<8x32xf32>
    %cst_43 = arith.constant 1.000000e+00 : f32
    %110 = vector.broadcast %cst_43 : f32 to vector<8x32xf32>
    %111 = arith.addf %110, %109 : vector<8x32xf32>
    %112 = arith.divf %110, %111 : vector<8x32xf32>
    %113 = arith.mulf %98, %85 : vector<8x32xf32>
    %114 = arith.mulf %104, %106 : vector<8x32xf32>
    %115 = arith.addf %113, %114 : vector<8x32xf32>
    %116 = math.tanh %115 : vector<8x32xf32>
    %117 = arith.mulf %112, %116 : vector<8x32xf32>
    %c0_44 = arith.constant 0 : index
    %c0_45 = arith.constant 0 : index
    %118 = vector.load %arg6[%c0_44, %c0_45] : memref<8x32xf32, #tpu.memory_space<vmem>>, vector<8x32xf32>
    tpu.vector_store %arg6[%c0_44, %c0_45], %117 {strides = array<i32>} : memref<8x32xf32, #tpu.memory_space<vmem>>, vector<8x32xf32>,
    %c0_46 = arith.constant 0 : index
    %c0_47 = arith.constant 0 : index
    %119 = vector.load %arg7[%c0_46, %c0_47] : memref<8x32xf32, #tpu.memory_space<vmem>>, vector<8x32xf32>
    tpu.vector_store %arg7[%c0_46, %c0_47], %115 {strides = array<i32>} : memref<8x32xf32, #tpu.memory_space<vmem>>, vector<8x32xf32>,
    %120 = arith.index_cast %c2_i32 : i32 to index
    %c0_48 = arith.constant 0 : index
    %c0_49 = arith.constant 0 : index
    %121 = vector.load %arg5[%120, %c0_48, %c0_49] : memref<8x8x32xf32, #tpu.memory_space<vmem>>, vector<1x8x32xf32>
    %122 = vector.shape_cast %121 : vector<1x8x32xf32> to vector<8x32xf32>
    %123 = vector.shape_cast %117 : vector<8x32xf32> to vector<1x8x32xf32>
    tpu.vector_store %arg5[%120, %c0_48, %c0_49], %123 {strides = array<i32>} : memref<8x8x32xf32, #tpu.memory_space<vmem>>, vector<1x8x32xf32>,
    %c3_i32 = arith.constant 3 : i32
    %c0_50 = arith.constant 0 : index
    %c0_51 = arith.constant 0 : index
    %124 = vector.load %arg6[%c0_50, %c0_51] : memref<8x32xf32, #tpu.memory_space<vmem>>, vector<8x32xf32>
    %c0_52 = arith.constant 0 : index
    %c0_53 = arith.constant 0 : index
    %125 = vector.load %arg7[%c0_52, %c0_53] : memref<8x32xf32, #tpu.memory_space<vmem>>, vector<8x32xf32>
    %126 = arith.index_cast %c3_i32 : i32 to index
    %c0_54 = arith.constant 0 : index
    %c0_55 = arith.constant 0 : index
    %127 = vector.load %arg1[%126, %c0_54, %c0_55] : memref<8x8x128xbf16, #tpu.memory_space<vmem>>, vector<1x8x128xbf16>
    %128 = vector.shape_cast %127 : vector<1x8x128xbf16> to vector<8x128xbf16>
    %129 = arith.extf %128 : vector<8x128xbf16> to vector<8x128xf32>
    %130 = arith.truncf %124 : vector<8x32xf32> to vector<8x32xbf16>
    %cst_56 = arith.constant dense<0.000000e+00> : vector<8x128xf32>
    %131 = tpu.matmul %130, %3, %cst_56 {dimension_numbers = #tpu.dot_dimension_numbers<[1], [0], [0], [1], [0, 0, 1, 1], [], []>} : vector<8x32xbf16>, vector<32x128xbf16>, vector<8x128xf32> -> vector<8x128xf32>
    %132 = arith.addf %129, %131 : vector<8x128xf32>
    %133 = vector.extract_strided_slice %132 {offsets = [0, 0], sizes = [8, 32], strides = [1, 1]} : vector<8x128xf32> to vector<8x32xf32>
    %134 = arith.negf %133 : vector<8x32xf32>
    %135 = math.exp %134 : vector<8x32xf32>
    %cst_57 = arith.constant 1.000000e+00 : f32
    %136 = vector.broadcast %cst_57 : f32 to vector<8x32xf32>
    %137 = arith.addf %136, %135 : vector<8x32xf32>
    %138 = arith.divf %136, %137 : vector<8x32xf32>
    %139 = vector.extract_strided_slice %132 {offsets = [0, 32], sizes = [8, 32], strides = [1, 1]} : vector<8x128xf32> to vector<8x32xf32>
    %140 = arith.negf %139 : vector<8x32xf32>
    %141 = math.exp %140 : vector<8x32xf32>
    %cst_58 = arith.constant 1.000000e+00 : f32
    %142 = vector.broadcast %cst_58 : f32 to vector<8x32xf32>
    %143 = arith.addf %142, %141 : vector<8x32xf32>
    %144 = arith.divf %142, %143 : vector<8x32xf32>
    %145 = vector.extract_strided_slice %132 {offsets = [0, 64], sizes = [8, 32], strides = [1, 1]} : vector<8x128xf32> to vector<8x32xf32>
    %146 = math.tanh %145 : vector<8x32xf32>
    %147 = vector.extract_strided_slice %132 {offsets = [0, 96], sizes = [8, 32], strides = [1, 1]} : vector<8x128xf32> to vector<8x32xf32>
    %148 = arith.negf %147 : vector<8x32xf32>
    %149 = math.exp %148 : vector<8x32xf32>
    %cst_59 = arith.constant 1.000000e+00 : f32
    %150 = vector.broadcast %cst_59 : f32 to vector<8x32xf32>
    %151 = arith.addf %150, %149 : vector<8x32xf32>
    %152 = arith.divf %150, %151 : vector<8x32xf32>
    %153 = arith.mulf %138, %125 : vector<8x32xf32>
    %154 = arith.mulf %144, %146 : vector<8x32xf32>
    %155 = arith.addf %153, %154 : vector<8x32xf32>
    %156 = math.tanh %155 : vector<8x32xf32>
    %157 = arith.mulf %152, %156 : vector<8x32xf32>
    %c0_60 = arith.constant 0 : index
    %c0_61 = arith.constant 0 : index
    %158 = vector.load %arg6[%c0_60, %c0_61] : memref<8x32xf32, #tpu.memory_space<vmem>>, vector<8x32xf32>
    tpu.vector_store %arg6[%c0_60, %c0_61], %157 {strides = array<i32>} : memref<8x32xf32, #tpu.memory_space<vmem>>, vector<8x32xf32>,
    %c0_62 = arith.constant 0 : index
    %c0_63 = arith.constant 0 : index
    %159 = vector.load %arg7[%c0_62, %c0_63] : memref<8x32xf32, #tpu.memory_space<vmem>>, vector<8x32xf32>
    tpu.vector_store %arg7[%c0_62, %c0_63], %155 {strides = array<i32>} : memref<8x32xf32, #tpu.memory_space<vmem>>, vector<8x32xf32>,
    %160 = arith.index_cast %c3_i32 : i32 to index
    %c0_64 = arith.constant 0 : index
    %c0_65 = arith.constant 0 : index
    %161 = vector.load %arg5[%160, %c0_64, %c0_65] : memref<8x8x32xf32, #tpu.memory_space<vmem>>, vector<1x8x32xf32>
    %162 = vector.shape_cast %161 : vector<1x8x32xf32> to vector<8x32xf32>
    %163 = vector.shape_cast %157 : vector<8x32xf32> to vector<1x8x32xf32>
    tpu.vector_store %arg5[%160, %c0_64, %c0_65], %163 {strides = array<i32>} : memref<8x8x32xf32, #tpu.memory_space<vmem>>, vector<1x8x32xf32>,
    %c4_i32 = arith.constant 4 : i32
    %c0_66 = arith.constant 0 : index
    %c0_67 = arith.constant 0 : index
    %164 = vector.load %arg6[%c0_66, %c0_67] : memref<8x32xf32, #tpu.memory_space<vmem>>, vector<8x32xf32>
    %c0_68 = arith.constant 0 : index
    %c0_69 = arith.constant 0 : index
    %165 = vector.load %arg7[%c0_68, %c0_69] : memref<8x32xf32, #tpu.memory_space<vmem>>, vector<8x32xf32>
    %166 = arith.index_cast %c4_i32 : i32 to index
    %c0_70 = arith.constant 0 : index
    %c0_71 = arith.constant 0 : index
    %167 = vector.load %arg1[%166, %c0_70, %c0_71] : memref<8x8x128xbf16, #tpu.memory_space<vmem>>, vector<1x8x128xbf16>
    %168 = vector.shape_cast %167 : vector<1x8x128xbf16> to vector<8x128xbf16>
    %169 = arith.extf %168 : vector<8x128xbf16> to vector<8x128xf32>
    %170 = arith.truncf %164 : vector<8x32xf32> to vector<8x32xbf16>
    %cst_72 = arith.constant dense<0.000000e+00> : vector<8x128xf32>
    %171 = tpu.matmul %170, %3, %cst_72 {dimension_numbers = #tpu.dot_dimension_numbers<[1], [0], [0], [1], [0, 0, 1, 1], [], []>} : vector<8x32xbf16>, vector<32x128xbf16>, vector<8x128xf32> -> vector<8x128xf32>
    %172 = arith.addf %169, %171 : vector<8x128xf32>
    %173 = vector.extract_strided_slice %172 {offsets = [0, 0], sizes = [8, 32], strides = [1, 1]} : vector<8x128xf32> to vector<8x32xf32>
    %174 = arith.negf %173 : vector<8x32xf32>
    %175 = math.exp %174 : vector<8x32xf32>
    %cst_73 = arith.constant 1.000000e+00 : f32
    %176 = vector.broadcast %cst_73 : f32 to vector<8x32xf32>
    %177 = arith.addf %176, %175 : vector<8x32xf32>
    %178 = arith.divf %176, %177 : vector<8x32xf32>
    %179 = vector.extract_strided_slice %172 {offsets = [0, 32], sizes = [8, 32], strides = [1, 1]} : vector<8x128xf32> to vector<8x32xf32>
    %180 = arith.negf %179 : vector<8x32xf32>
    %181 = math.exp %180 : vector<8x32xf32>
    %cst_74 = arith.constant 1.000000e+00 : f32
    %182 = vector.broadcast %cst_74 : f32 to vector<8x32xf32>
    %183 = arith.addf %182, %181 : vector<8x32xf32>
    %184 = arith.divf %182, %183 : vector<8x32xf32>
    %185 = vector.extract_strided_slice %172 {offsets = [0, 64], sizes = [8, 32], strides = [1, 1]} : vector<8x128xf32> to vector<8x32xf32>
    %186 = math.tanh %185 : vector<8x32xf32>
    %187 = vector.extract_strided_slice %172 {offsets = [0, 96], sizes = [8, 32], strides = [1, 1]} : vector<8x128xf32> to vector<8x32xf32>
    %188 = arith.negf %187 : vector<8x32xf32>
    %189 = math.exp %188 : vector<8x32xf32>
    %cst_75 = arith.constant 1.000000e+00 : f32
    %190 = vector.broadcast %cst_75 : f32 to vector<8x32xf32>
    %191 = arith.addf %190, %189 : vector<8x32xf32>
    %192 = arith.divf %190, %191 : vector<8x32xf32>
    %193 = arith.mulf %178, %165 : vector<8x32xf32>
    %194 = arith.mulf %184, %186 : vector<8x32xf32>
    %195 = arith.addf %193, %194 : vector<8x32xf32>
    %196 = math.tanh %195 : vector<8x32xf32>
    %197 = arith.mulf %192, %196 : vector<8x32xf32>
    %c0_76 = arith.constant 0 : index
    %c0_77 = arith.constant 0 : index
    %198 = vector.load %arg6[%c0_76, %c0_77] : memref<8x32xf32, #tpu.memory_space<vmem>>, vector<8x32xf32>
    tpu.vector_store %arg6[%c0_76, %c0_77], %197 {strides = array<i32>} : memref<8x32xf32, #tpu.memory_space<vmem>>, vector<8x32xf32>,
    %c0_78 = arith.constant 0 : index
    %c0_79 = arith.constant 0 : index
    %199 = vector.load %arg7[%c0_78, %c0_79] : memref<8x32xf32, #tpu.memory_space<vmem>>, vector<8x32xf32>
    tpu.vector_store %arg7[%c0_78, %c0_79], %195 {strides = array<i32>} : memref<8x32xf32, #tpu.memory_space<vmem>>, vector<8x32xf32>,
    %200 = arith.index_cast %c4_i32 : i32 to index
    %c0_80 = arith.constant 0 : index
    %c0_81 = arith.constant 0 : index
    %201 = vector.load %arg5[%200, %c0_80, %c0_81] : memref<8x8x32xf32, #tpu.memory_space<vmem>>, vector<1x8x32xf32>
    %202 = vector.shape_cast %201 : vector<1x8x32xf32> to vector<8x32xf32>
    %203 = vector.shape_cast %197 : vector<8x32xf32> to vector<1x8x32xf32>
    tpu.vector_store %arg5[%200, %c0_80, %c0_81], %203 {strides = array<i32>} : memref<8x8x32xf32, #tpu.memory_space<vmem>>, vector<1x8x32xf32>,
    %c5_i32 = arith.constant 5 : i32
    %c0_82 = arith.constant 0 : index
    %c0_83 = arith.constant 0 : index
    %204 = vector.load %arg6[%c0_82, %c0_83] : memref<8x32xf32, #tpu.memory_space<vmem>>, vector<8x32xf32>
    %c0_84 = arith.constant 0 : index
    %c0_85 = arith.constant 0 : index
    %205 = vector.load %arg7[%c0_84, %c0_85] : memref<8x32xf32, #tpu.memory_space<vmem>>, vector<8x32xf32>
    %206 = arith.index_cast %c5_i32 : i32 to index
    %c0_86 = arith.constant 0 : index
    %c0_87 = arith.constant 0 : index
    %207 = vector.load %arg1[%206, %c0_86, %c0_87] : memref<8x8x128xbf16, #tpu.memory_space<vmem>>, vector<1x8x128xbf16>
    %208 = vector.shape_cast %207 : vector<1x8x128xbf16> to vector<8x128xbf16>
    %209 = arith.extf %208 : vector<8x128xbf16> to vector<8x128xf32>
    %210 = arith.truncf %204 : vector<8x32xf32> to vector<8x32xbf16>
    %cst_88 = arith.constant dense<0.000000e+00> : vector<8x128xf32>
    %211 = tpu.matmul %210, %3, %cst_88 {dimension_numbers = #tpu.dot_dimension_numbers<[1], [0], [0], [1], [0, 0, 1, 1], [], []>} : vector<8x32xbf16>, vector<32x128xbf16>, vector<8x128xf32> -> vector<8x128xf32>
    %212 = arith.addf %209, %211 : vector<8x128xf32>
    %213 = vector.extract_strided_slice %212 {offsets = [0, 0], sizes = [8, 32], strides = [1, 1]} : vector<8x128xf32> to vector<8x32xf32>
    %214 = arith.negf %213 : vector<8x32xf32>
    %215 = math.exp %214 : vector<8x32xf32>
    %cst_89 = arith.constant 1.000000e+00 : f32
    %216 = vector.broadcast %cst_89 : f32 to vector<8x32xf32>
    %217 = arith.addf %216, %215 : vector<8x32xf32>
    %218 = arith.divf %216, %217 : vector<8x32xf32>
    %219 = vector.extract_strided_slice %212 {offsets = [0, 32], sizes = [8, 32], strides = [1, 1]} : vector<8x128xf32> to vector<8x32xf32>
    %220 = arith.negf %219 : vector<8x32xf32>
    %221 = math.exp %220 : vector<8x32xf32>
    %cst_90 = arith.constant 1.000000e+00 : f32
    %222 = vector.broadcast %cst_90 : f32 to vector<8x32xf32>
    %223 = arith.addf %222, %221 : vector<8x32xf32>
    %224 = arith.divf %222, %223 : vector<8x32xf32>
    %225 = vector.extract_strided_slice %212 {offsets = [0, 64], sizes = [8, 32], strides = [1, 1]} : vector<8x128xf32> to vector<8x32xf32>
    %226 = math.tanh %225 : vector<8x32xf32>
    %227 = vector.extract_strided_slice %212 {offsets = [0, 96], sizes = [8, 32], strides = [1, 1]} : vector<8x128xf32> to vector<8x32xf32>
    %228 = arith.negf %227 : vector<8x32xf32>
    %229 = math.exp %228 : vector<8x32xf32>
    %cst_91 = arith.constant 1.000000e+00 : f32
    %230 = vector.broadcast %cst_91 : f32 to vector<8x32xf32>
    %231 = arith.addf %230, %229 : vector<8x32xf32>
    %232 = arith.divf %230, %231 : vector<8x32xf32>
    %233 = arith.mulf %218, %205 : vector<8x32xf32>
    %234 = arith.mulf %224, %226 : vector<8x32xf32>
    %235 = arith.addf %233, %234 : vector<8x32xf32>
    %236 = math.tanh %235 : vector<8x32xf32>
    %237 = arith.mulf %232, %236 : vector<8x32xf32>
    %c0_92 = arith.constant 0 : index
    %c0_93 = arith.constant 0 : index
    %238 = vector.load %arg6[%c0_92, %c0_93] : memref<8x32xf32, #tpu.memory_space<vmem>>, vector<8x32xf32>
    tpu.vector_store %arg6[%c0_92, %c0_93], %237 {strides = array<i32>} : memref<8x32xf32, #tpu.memory_space<vmem>>, vector<8x32xf32>,
    %c0_94 = arith.constant 0 : index
    %c0_95 = arith.constant 0 : index
    %239 = vector.load %arg7[%c0_94, %c0_95] : memref<8x32xf32, #tpu.memory_space<vmem>>, vector<8x32xf32>
    tpu.vector_store %arg7[%c0_94, %c0_95], %235 {strides = array<i32>} : memref<8x32xf32, #tpu.memory_space<vmem>>, vector<8x32xf32>,
    %240 = arith.index_cast %c5_i32 : i32 to index
    %c0_96 = arith.constant 0 : index
    %c0_97 = arith.constant 0 : index
    %241 = vector.load %arg5[%240, %c0_96, %c0_97] : memref<8x8x32xf32, #tpu.memory_space<vmem>>, vector<1x8x32xf32>
    %242 = vector.shape_cast %241 : vector<1x8x32xf32> to vector<8x32xf32>
    %243 = vector.shape_cast %237 : vector<8x32xf32> to vector<1x8x32xf32>
    tpu.vector_store %arg5[%240, %c0_96, %c0_97], %243 {strides = array<i32>} : memref<8x8x32xf32, #tpu.memory_space<vmem>>, vector<1x8x32xf32>,
    %c6_i32 = arith.constant 6 : i32
    %c0_98 = arith.constant 0 : index
    %c0_99 = arith.constant 0 : index
    %244 = vector.load %arg6[%c0_98, %c0_99] : memref<8x32xf32, #tpu.memory_space<vmem>>, vector<8x32xf32>
    %c0_100 = arith.constant 0 : index
    %c0_101 = arith.constant 0 : index
    %245 = vector.load %arg7[%c0_100, %c0_101] : memref<8x32xf32, #tpu.memory_space<vmem>>, vector<8x32xf32>
    %246 = arith.index_cast %c6_i32 : i32 to index
    %c0_102 = arith.constant 0 : index
    %c0_103 = arith.constant 0 : index
    %247 = vector.load %arg1[%246, %c0_102, %c0_103] : memref<8x8x128xbf16, #tpu.memory_space<vmem>>, vector<1x8x128xbf16>
    %248 = vector.shape_cast %247 : vector<1x8x128xbf16> to vector<8x128xbf16>
    %249 = arith.extf %248 : vector<8x128xbf16> to vector<8x128xf32>
    %250 = arith.truncf %244 : vector<8x32xf32> to vector<8x32xbf16>
    %cst_104 = arith.constant dense<0.000000e+00> : vector<8x128xf32>
    %251 = tpu.matmul %250, %3, %cst_104 {dimension_numbers = #tpu.dot_dimension_numbers<[1], [0], [0], [1], [0, 0, 1, 1], [], []>} : vector<8x32xbf16>, vector<32x128xbf16>, vector<8x128xf32> -> vector<8x128xf32>
    %252 = arith.addf %249, %251 : vector<8x128xf32>
    %253 = vector.extract_strided_slice %252 {offsets = [0, 0], sizes = [8, 32], strides = [1, 1]} : vector<8x128xf32> to vector<8x32xf32>
    %254 = arith.negf %253 : vector<8x32xf32>
    %255 = math.exp %254 : vector<8x32xf32>
    %cst_105 = arith.constant 1.000000e+00 : f32
    %256 = vector.broadcast %cst_105 : f32 to vector<8x32xf32>
    %257 = arith.addf %256, %255 : vector<8x32xf32>
    %258 = arith.divf %256, %257 : vector<8x32xf32>
    %259 = vector.extract_strided_slice %252 {offsets = [0, 32], sizes = [8, 32], strides = [1, 1]} : vector<8x128xf32> to vector<8x32xf32>
    %260 = arith.negf %259 : vector<8x32xf32>
    %261 = math.exp %260 : vector<8x32xf32>
    %cst_106 = arith.constant 1.000000e+00 : f32
    %262 = vector.broadcast %cst_106 : f32 to vector<8x32xf32>
    %263 = arith.addf %262, %261 : vector<8x32xf32>
    %264 = arith.divf %262, %263 : vector<8x32xf32>
    %265 = vector.extract_strided_slice %252 {offsets = [0, 64], sizes = [8, 32], strides = [1, 1]} : vector<8x128xf32> to vector<8x32xf32>
    %266 = math.tanh %265 : vector<8x32xf32>
    %267 = vector.extract_strided_slice %252 {offsets = [0, 96], sizes = [8, 32], strides = [1, 1]} : vector<8x128xf32> to vector<8x32xf32>
    %268 = arith.negf %267 : vector<8x32xf32>
    %269 = math.exp %268 : vector<8x32xf32>
    %cst_107 = arith.constant 1.000000e+00 : f32
    %270 = vector.broadcast %cst_107 : f32 to vector<8x32xf32>
    %271 = arith.addf %270, %269 : vector<8x32xf32>
    %272 = arith.divf %270, %271 : vector<8x32xf32>
    %273 = arith.mulf %258, %245 : vector<8x32xf32>
    %274 = arith.mulf %264, %266 : vector<8x32xf32>
    %275 = arith.addf %273, %274 : vector<8x32xf32>
    %276 = math.tanh %275 : vector<8x32xf32>
    %277 = arith.mulf %272, %276 : vector<8x32xf32>
    %c0_108 = arith.constant 0 : index
    %c0_109 = arith.constant 0 : index
    %278 = vector.load %arg6[%c0_108, %c0_109] : memref<8x32xf32, #tpu.memory_space<vmem>>, vector<8x32xf32>
    tpu.vector_store %arg6[%c0_108, %c0_109], %277 {strides = array<i32>} : memref<8x32xf32, #tpu.memory_space<vmem>>, vector<8x32xf32>,
    %c0_110 = arith.constant 0 : index
    %c0_111 = arith.constant 0 : index
    %279 = vector.load %arg7[%c0_110, %c0_111] : memref<8x32xf32, #tpu.memory_space<vmem>>, vector<8x32xf32>
    tpu.vector_store %arg7[%c0_110, %c0_111], %275 {strides = array<i32>} : memref<8x32xf32, #tpu.memory_space<vmem>>, vector<8x32xf32>,
    %280 = arith.index_cast %c6_i32 : i32 to index
    %c0_112 = arith.constant 0 : index
    %c0_113 = arith.constant 0 : index
    %281 = vector.load %arg5[%280, %c0_112, %c0_113] : memref<8x8x32xf32, #tpu.memory_space<vmem>>, vector<1x8x32xf32>
    %282 = vector.shape_cast %281 : vector<1x8x32xf32> to vector<8x32xf32>
    %283 = vector.shape_cast %277 : vector<8x32xf32> to vector<1x8x32xf32>
    tpu.vector_store %arg5[%280, %c0_112, %c0_113], %283 {strides = array<i32>} : memref<8x8x32xf32, #tpu.memory_space<vmem>>, vector<1x8x32xf32>,
    %c7_i32 = arith.constant 7 : i32
    %c0_114 = arith.constant 0 : index
    %c0_115 = arith.constant 0 : index
    %284 = vector.load %arg6[%c0_114, %c0_115] : memref<8x32xf32, #tpu.memory_space<vmem>>, vector<8x32xf32>
    %c0_116 = arith.constant 0 : index
    %c0_117 = arith.constant 0 : index
    %285 = vector.load %arg7[%c0_116, %c0_117] : memref<8x32xf32, #tpu.memory_space<vmem>>, vector<8x32xf32>
    %286 = arith.index_cast %c7_i32 : i32 to index
    %c0_118 = arith.constant 0 : index
    %c0_119 = arith.constant 0 : index
    %287 = vector.load %arg1[%286, %c0_118, %c0_119] : memref<8x8x128xbf16, #tpu.memory_space<vmem>>, vector<1x8x128xbf16>
    %288 = vector.shape_cast %287 : vector<1x8x128xbf16> to vector<8x128xbf16>
    %289 = arith.extf %288 : vector<8x128xbf16> to vector<8x128xf32>
    %290 = arith.truncf %284 : vector<8x32xf32> to vector<8x32xbf16>
    %cst_120 = arith.constant dense<0.000000e+00> : vector<8x128xf32>
    %291 = tpu.matmul %290, %3, %cst_120 {dimension_numbers = #tpu.dot_dimension_numbers<[1], [0], [0], [1], [0, 0, 1, 1], [], []>} : vector<8x32xbf16>, vector<32x128xbf16>, vector<8x128xf32> -> vector<8x128xf32>
    %292 = arith.addf %289, %291 : vector<8x128xf32>
    %293 = vector.extract_strided_slice %292 {offsets = [0, 0], sizes = [8, 32], strides = [1, 1]} : vector<8x128xf32> to vector<8x32xf32>
    %294 = arith.negf %293 : vector<8x32xf32>
    %295 = math.exp %294 : vector<8x32xf32>
    %cst_121 = arith.constant 1.000000e+00 : f32
    %296 = vector.broadcast %cst_121 : f32 to vector<8x32xf32>
    %297 = arith.addf %296, %295 : vector<8x32xf32>
    %298 = arith.divf %296, %297 : vector<8x32xf32>
    %299 = vector.extract_strided_slice %292 {offsets = [0, 32], sizes = [8, 32], strides = [1, 1]} : vector<8x128xf32> to vector<8x32xf32>
    %300 = arith.negf %299 : vector<8x32xf32>
    %301 = math.exp %300 : vector<8x32xf32>
    %cst_122 = arith.constant 1.000000e+00 : f32
    %302 = vector.broadcast %cst_122 : f32 to vector<8x32xf32>
    %303 = arith.addf %302, %301 : vector<8x32xf32>
    %304 = arith.divf %302, %303 : vector<8x32xf32>
    %305 = vector.extract_strided_slice %292 {offsets = [0, 64], sizes = [8, 32], strides = [1, 1]} : vector<8x128xf32> to vector<8x32xf32>
    %306 = math.tanh %305 : vector<8x32xf32>
    %307 = vector.extract_strided_slice %292 {offsets = [0, 96], sizes = [8, 32], strides = [1, 1]} : vector<8x128xf32> to vector<8x32xf32>
    %308 = arith.negf %307 : vector<8x32xf32>
    %309 = math.exp %308 : vector<8x32xf32>
    %cst_123 = arith.constant 1.000000e+00 : f32
    %310 = vector.broadcast %cst_123 : f32 to vector<8x32xf32>
    %311 = arith.addf %310, %309 : vector<8x32xf32>
    %312 = arith.divf %310, %311 : vector<8x32xf32>
    %313 = arith.mulf %298, %285 : vector<8x32xf32>
    %314 = arith.mulf %304, %306 : vector<8x32xf32>
    %315 = arith.addf %313, %314 : vector<8x32xf32>
    %316 = math.tanh %315 : vector<8x32xf32>
    %317 = arith.mulf %312, %316 : vector<8x32xf32>
    %c0_124 = arith.constant 0 : index
    %c0_125 = arith.constant 0 : index
    %318 = vector.load %arg6[%c0_124, %c0_125] : memref<8x32xf32, #tpu.memory_space<vmem>>, vector<8x32xf32>
    tpu.vector_store %arg6[%c0_124, %c0_125], %317 {strides = array<i32>} : memref<8x32xf32, #tpu.memory_space<vmem>>, vector<8x32xf32>,
    %c0_126 = arith.constant 0 : index
    %c0_127 = arith.constant 0 : index
    %319 = vector.load %arg7[%c0_126, %c0_127] : memref<8x32xf32, #tpu.memory_space<vmem>>, vector<8x32xf32>
    tpu.vector_store %arg7[%c0_126, %c0_127], %315 {strides = array<i32>} : memref<8x32xf32, #tpu.memory_space<vmem>>, vector<8x32xf32>,
    %320 = arith.index_cast %c7_i32 : i32 to index
    %c0_128 = arith.constant 0 : index
    %c0_129 = arith.constant 0 : index
    %321 = vector.load %arg5[%320, %c0_128, %c0_129] : memref<8x8x32xf32, #tpu.memory_space<vmem>>, vector<1x8x32xf32>
    %322 = vector.shape_cast %321 : vector<1x8x32xf32> to vector<8x32xf32>
    %323 = vector.shape_cast %317 : vector<8x32xf32> to vector<1x8x32xf32>
    tpu.vector_store %arg5[%320, %c0_128, %c0_129], %323 {strides = array<i32>} : memref<8x8x32xf32, #tpu.memory_space<vmem>>, vector<1x8x32xf32>,
    %c8_i32 = arith.constant 8 : i32
    return
  }
  func.func @transform_0(%arg0: i32) -> (i32, i32, i32) {
    %c0_i32 = arith.constant 0 : i32
    %c0_i32_0 = arith.constant 0 : i32
    %c0_i32_1 = arith.constant 0 : i32
    return %arg0, %c0_i32, %c0_i32_0 : i32, i32, i32
  }
  func.func @transform_1(%arg0: i32) -> (i32, i32) {
    %c0_i32 = arith.constant 0 : i32
    %c0_i32_0 = arith.constant 0 : i32
    %c0_i32_1 = arith.constant 0 : i32
    return %c0_i32, %c0_i32_0 : i32, i32
  }
  func.func @transform_2(%arg0: i32) -> (i32, i32) {
    %c0_i32 = arith.constant 0 : i32
    %c0_i32_0 = arith.constant 0 : i32
    %c0_i32_1 = arith.constant 0 : i32
    return %c0_i32, %c0_i32_0 : i32, i32
  }
  func.func @transform_3(%arg0: i32) -> (i32, i32) {
    %c0_i32 = arith.constant 0 : i32
    %c0_i32_0 = arith.constant 0 : i32
    %c0_i32_1 = arith.constant 0 : i32
    return %c0_i32, %c0_i32_0 : i32, i32
  }
  func.func @transform_4(%arg0: i32) -> (i32, i32, i32) {
    %c0_i32 = arith.constant 0 : i32
    %c0_i32_0 = arith.constant 0 : i32
    %c0_i32_1 = arith.constant 0 : i32
    return %arg0, %c0_i32, %c0_i32_0 : i32, i32, i32
  }
  func.func @transform_5(%arg0: i32) -> (i32, i32) {
    %c0_i32 = arith.constant 0 : i32
    %c0_i32_0 = arith.constant 0 : i32
    %c0_i32_1 = arith.constant 0 : i32
    return %c0_i32, %c0_i32_0 : i32, i32
  }
  func.func @transform_6(%arg0: i32) -> (i32, i32) {
    %c0_i32 = arith.constant 0 : i32
    %c0_i32_0 = arith.constant 0 : i32
    %c0_i32_1 = arith.constant 0 : i32
    return %c0_i32, %c0_i32_0 : i32, i32
  }
}

</mosaic_0001>

<llo_original>
// kernel: lstm_forward_sequence.3
$region0: #{lstm_forward_sequence.3}
  #allocation0 [shape = 'u32[]', space=smem, size = 0x4, offset = 0x4, fixed_abs, tag = 'smem constant byte address 0x4 - core index']
  #allocation1 [shape = 'u32[144,128]{1,0:T(1,128)}', space=vmem, size = 0x12000, scoped, tag = 'internal scratch']
  %s0 = inlined_call_operand.hbm [shape: f32[8,8,32], index: 0, kind: input, shape index: {}]
  %s1 = inlined_call_operand.vmem [shape: f32[8,8,32], index: 1, kind: output, shape index: {}]
  %s2 = sld [smem:[#allocation0]]
  $region18: #{lstm_forward_sequence.3} parent=0
    _
  %s4 = ssub.s32 1, %s2
  %s5 = scalar_select 0, %s4, %s2
  $region1: #{lstm_forward_sequence.3} parent=0
    #allocation2 [shape = 'u8[32768]{0}', space=vmem, size = 0x8000, scoped, tag = 'input window, operand 0, single buffered']
    #allocation3 [shape = 's32[1]{0}', space=sflag, size = 0x4, scoped, tag = 'scoped memory for lstm_forward_sequence.3']
    %6 = vsyncpa [#allocation3], 0
    // Predicated region
    $region2: #{lstm_forward_sequence.3} parent=1 // pred_check
      _
    $region3: #{lstm_forward_sequence.3} parent=1 // pred_check_branch
      %8 = sbr.rel (0) target = $region5
    $region4: #{lstm_forward_sequence.3} parent=1 // pred_region
      %s10 = ssub.s32 1024, 1024
      %11 = vsyncadd [#allocation3], %s10
      %s12 = sshll.u32 [#allocation2], 4
      %s13 = int_to_ptr.vmem [resolvable:$true] %s12
      %18 = dma.hbm_to_vmem [thread:$0]  %s0, 1024, %s13, [#allocation3], 128, 128, 8
    $region5: #{lstm_forward_sequence.3} parent=1 // pred_fallthru
      _
    // Predicated region
    $region6: #{lstm_forward_sequence.3} parent=1 // pred_check
      _
    $region7: #{lstm_forward_sequence.3} parent=1 // pred_check_branch
      %20 = sbr.rel (0) target = $region9
    $region8: #{lstm_forward_sequence.3} parent=1 // pred_region
      %21 = dma.done [#allocation3], 1024
    $region9: #{lstm_forward_sequence.3} parent=1 // pred_fallthru
      _
    %v22 = vld [vmem:[#allocation2] sm:$0xff]
    %v23 = vld [vmem:[#allocation2 + $0x8] sm:$0xff]
    %v24 = vld [vmem:[#allocation2 + $0x10] sm:$0xff]
    %v25 = vld [vmem:[#allocation2 + $0x18] sm:$0xff]
    %v26 = vld [vmem:[#allocation2 + $0x20] sm:$0xff]
    %v27 = vld [vmem:[#allocation2 + $0x28] sm:$0xff]
    %v28 = vld [vmem:[#allocation2 + $0x30] sm:$0xff]
    %v29 = vld [vmem:[#allocation2 + $0x38] sm:$0xff]
    %vm30 = vcmask 261120
    %v31 = vsel %vm30, %v22, -inf
    %32 = vmax.xlane.f32.xlu0 %v31
    %v33 = vpop.xlane.xlu0 %32
    %v34 = vsel %vm30, %v23, -inf
    %35 = vmax.xlane.f32.xlu0 %v34
    %v36 = vpop.xlane.xlu0 %35
    %v37 = vsel %vm30, %v24, -inf
    %38 = vmax.xlane.f32.xlu0 %v37
    %v39 = vpop.xlane.xlu0 %38
    %v40 = vsel %vm30, %v25, -inf
    %41 = vmax.xlane.f32.xlu0 %v40
    %v42 = vpop.xlane.xlu0 %41
    %v43 = vsel %vm30, %v26, -inf
    %44 = vmax.xlane.f32.xlu0 %v43
    %v45 = vpop.xlane.xlu0 %44
    %v46 = vsel %vm30, %v27, -inf
    %47 = vmax.xlane.f32.xlu0 %v46
    %v48 = vpop.xlane.xlu0 %47
    %v49 = vsel %vm30, %v28, -inf
    %50 = vmax.xlane.f32.xlu0 %v49
    %v51 = vpop.xlane.xlu0 %50
    %v52 = vsel %vm30, %v29, -inf
    %53 = vmax.xlane.f32.xlu0 %v52
    %v54 = vpop.xlane.xlu0 %53
    %v55 = vsub.f32 %v22, %v33
    %v56 = vsub.f32 %v23, %v36
    %v57 = vsub.f32 %v24, %v39
    %v58 = vsub.f32 %v25, %v42
    %v59 = vsub.f32 %v26, %v45
    %v60 = vsub.f32 %v27, %v48
    %v61 = vsub.f32 %v28, %v51
    %v62 = vsub.f32 %v29, %v54
    %v63 = vmul.f32 %v55, 1.442695
    %v64 = vpow.pop %v63
    %v65 = vmul.f32 %v56, 1.442695
    %v66 = vpow.pop %v65
    %v67 = vmul.f32 %v57, 1.442695
    %v68 = vpow.pop %v67
    %v69 = vmul.f32 %v58, 1.442695
    %v70 = vpow.pop %v69
    %v71 = vmul.f32 %v59, 1.442695
    %v72 = vpow.pop %v71
    %v73 = vmul.f32 %v60, 1.442695
    %v74 = vpow.pop %v73
    %v75 = vmul.f32 %v61, 1.442695
    %v76 = vpow.pop %v75
    %v77 = vmul.f32 %v62, 1.442695
    %v78 = vpow.pop %v77
    %v79 = vsel %vm30, %v64, 0.0
    %80 = vadd.xlane.f32.xlu0 %v79
    %v81 = vpop.xlane.xlu0 %80
    %v82 = vsel %vm30, %v66, 0.0
    %83 = vadd.xlane.f32.xlu0 %v82
    %v84 = vpop.xlane.xlu0 %83
    %v85 = vsel %vm30, %v68, 0.0
    %86 = vadd.xlane.f32.xlu0 %v85
    %v87 = vpop.xlane.xlu0 %86
    %v88 = vsel %vm30, %v70, 0.0
    %89 = vadd.xlane.f32.xlu0 %v88
    %v90 = vpop.xlane.xlu0 %89
    %v91 = vsel %vm30, %v72, 0.0
    %92 = vadd.xlane.f32.xlu0 %v91
    %v93 = vpop.xlane.xlu0 %92
    %v94 = vsel %vm30, %v74, 0.0
    %95 = vadd.xlane.f32.xlu0 %v94
    %v96 = vpop.xlane.xlu0 %95
    %v97 = vsel %vm30, %v76, 0.0
    %98 = vadd.xlane.f32.xlu0 %v97
    %v99 = vpop.xlane.xlu0 %98
    %v100 = vsel %vm30, %v78, 0.0
    %101 = vadd.xlane.f32.xlu0 %v100
    %v102 = vpop.xlane.xlu0 %101
    %v103 = vlog2.pop %v81
    %v104 = vmul.f32 %v103, 0.6931472
    %v105 = vlog2.pop %v84
    %v106 = vmul.f32 %v105, 0.6931472
    %v107 = vlog2.pop %v87
    %v108 = vmul.f32 %v107, 0.6931472
    %v109 = vlog2.pop %v90
    %v110 = vmul.f32 %v109, 0.6931472
    %v111 = vlog2.pop %v93
    %v112 = vmul.f32 %v111, 0.6931472
    %v113 = vlog2.pop %v96
    %v114 = vmul.f32 %v113, 0.6931472
    %v115 = vlog2.pop %v99
    %v116 = vmul.f32 %v115, 0.6931472
    %v117 = vlog2.pop %v102
    %v118 = vmul.f32 %v117, 0.6931472
    %v119 = vsub.f32 %v55, %v104
    %v120 = vsub.f32 %v56, %v106
    %v121 = vsub.f32 %v57, %v108
    %v122 = vsub.f32 %v58, %v110
    %v123 = vsub.f32 %v59, %v112
    %v124 = vsub.f32 %v60, %v114
    %v125 = vsub.f32 %v61, %v116
    %v126 = vsub.f32 %v62, %v118
    %127 = vst.msk [vmem:[%s1] sm:$0xff] %vm30, %v119
    %128 = vst.msk [vmem:[%s1 + $0x8] sm:$0xff] %vm30, %v120
    %129 = vst.msk [vmem:[%s1 + $0x10] sm:$0xff] %vm30, %v121
    %130 = vst.msk [vmem:[%s1 + $0x18] sm:$0xff] %vm30, %v122
    %131 = vst.msk [vmem:[%s1 + $0x20] sm:$0xff] %vm30, %v123
    %132 = vst.msk [vmem:[%s1 + $0x28] sm:$0xff] %vm30, %v124
    %133 = vst.msk [vmem:[%s1 + $0x30] sm:$0xff] %vm30, %v125
    %134 = vst.msk [vmem:[%s1 + $0x38] sm:$0xff] %vm30, %v126
    // Predicated region
    $region10: #{lstm_forward_sequence.3} parent=1 // pred_check
      _
    $region11: #{lstm_forward_sequence.3} parent=1 // pred_check_branch
      %136 = sbr.rel (0) target = $region13
    $region12: #{lstm_forward_sequence.3} parent=1 // pred_region
      _
    $region13: #{lstm_forward_sequence.3} parent=1 // pred_fallthru
      _
    // Predicated region
    $region14: #{lstm_forward_sequence.3} parent=1 // pred_check
      _
    $region15: #{lstm_forward_sequence.3} parent=1 // pred_check_branch
      %138 = sbr.rel (0) target = $region17
    $region16: #{lstm_forward_sequence.3} parent=1 // pred_region
      _
    $region17: #{lstm_forward_sequence.3} parent=1 // pred_fallthru
      _
    %139 = vsyncpa [#allocation3], 1

// kernel: lstm_forward_sequence.2
$region0: #{lstm_forward_sequence.2}
  #allocation0 [shape = 'u32[]', space=smem, size = 0x4, offset = 0x4, fixed_abs, tag = 'smem constant byte address 0x4 - core index']
  #allocation1 [shape = 'u32[144,128]{1,0:T(1,128)}', space=vmem, size = 0x12000, scoped, tag = 'internal scratch']
  %s0 = inlined_call_operand.hbm [shape: bf16[8,8,128], index: 0, kind: input, shape index: {}]
  %s1 = inlined_call_operand.hbm [shape: bf16[32,128], index: 1, kind: input, shape index: {}]
  %s2 = inlined_call_operand.hbm [shape: f32[8,32], index: 2, kind: input, shape index: {}]
  %s3 = inlined_call_operand.hbm [shape: f32[8,32], index: 3, kind: input, shape index: {}]
  %s4 = inlined_call_operand.hbm [shape: f32[8,8,32], index: 4, kind: output, shape index: {0}]
  %s5 = inlined_call_operand.hbm [shape: f32[8,32], index: 5, kind: output, shape index: {1}]
  %s6 = inlined_call_operand.hbm [shape: f32[8,32], index: 6, kind: output, shape index: {2}]
  %7 = xla_tuple %s4, %s5, %s6
  %s8 = sld [smem:[#allocation0]]
  $region62: #{lstm_forward_sequence.2} parent=0
    _
  %s10 = ssub.s32 1, %s8
  %s11 = scalar_select 0, %s10, %s8
  $region1: #{lstm_forward_sequence.2} parent=0
    #allocation2 [shape = 'u8[16384]{0}', space=vmem, size = 0x4000, scoped, tag = 'input window, operand 0, single buffered']
    #allocation3 [shape = 's32[1]{0}', space=sflag, size = 0x4, scoped, tag = 'scoped memory for lstm_forward_sequence.2']
    #allocation4 [shape = 's32[1]{0}', space=sflag, size = 0x4, scoped, tag = 'scoped memory for lstm_forward_sequence.2']
    #allocation5 [shape = 'u8[8192]{0}', space=vmem, size = 0x2000, scoped, tag = 'input window, operand 1, single buffered']
    #allocation6 [shape = 's32[1]{0}', space=sflag, size = 0x4, scoped, tag = 'scoped memory for lstm_forward_sequence.2']
    #allocation7 [shape = 'u8[4096]{0}', space=vmem, size = 0x1000, scoped, tag = 'input window, operand 2, single buffered']
    #allocation8 [shape = 'u8[4096]{0}', space=vmem, size = 0x1000, scoped, tag = 'input window, operand 3, single buffered']
    #allocation9 [shape = 's32[1]{0}', space=sflag, size = 0x4, scoped, tag = 'scoped memory for lstm_forward_sequence.2']
    #allocation10 [shape = 'u8[32768]{0}', space=vmem, size = 0x8000, scoped, tag = 'output window, operand 0, single buffered']
    #allocation11 [shape = 'u8[4096]{0}', space=vmem, size = 0x1000, scoped, tag = 'output window, operand 1, single buffered']
    #allocation12 [shape = 's32[1]{0}', space=sflag, size = 0x4, scoped, tag = 'scoped memory for lstm_forward_sequence.2']
    #allocation13 [shape = 'u8[4096]{0}', space=vmem, size = 0x1000, scoped, tag = 'output window, operand 2, single buffered']
    %12 = vsyncpa [#allocation3], 0
    %13 = vsyncpa [#allocation6], 0
    %14 = vsyncpa [#allocation9], 0
    %15 = vsyncpa [#allocation4], 0
    %16 = vsyncpa [#allocation12], 0
    // Predicated region
    $region2: #{lstm_forward_sequence.2} parent=1 // pred_check
      _
    $region3: #{lstm_forward_sequence.2} parent=1 // pred_check_branch
      %18 = sbr.rel (0) target = $region5
    $region4: #{lstm_forward_sequence.2} parent=1 // pred_region
      %s20 = ssub.s32 512, 512
      %21 = vsyncadd [#allocation3], %s20
      %s22 = sshll.u32 [#allocation2], 4
      %s23 = int_to_ptr.vmem [resolvable:$true] %s22
      %28 = dma.hbm_to_vmem [thread:$0]  %s0, 512, %s23, [#allocation3], 64, 64, 4
    $region5: #{lstm_forward_sequence.2} parent=1 // pred_fallthru
      _
    // Predicated region
    $region6: #{lstm_forward_sequence.2} parent=1 // pred_check
      _
    $region7: #{lstm_forward_sequence.2} parent=1 // pred_check_branch
      %30 = sbr.rel (0) target = $region9
    $region8: #{lstm_forward_sequence.2} parent=1 // pred_region
      %s32 = ssub.s32 256, 256
      %33 = vsyncadd [#allocation6], %s32
      %s34 = sshll.u32 [#allocation5], 4
      %s35 = int_to_ptr.vmem [resolvable:$true] %s34
      %40 = dma.hbm_to_vmem [thread:$0]  %s1, 256, %s35, [#allocation6], 64, 64, 4
    $region9: #{lstm_forward_sequence.2} parent=1 // pred_fallthru
      _
    // Predicated region
    $region10: #{lstm_forward_sequence.2} parent=1 // pred_check
      _
    $region11: #{lstm_forward_sequence.2} parent=1 // pred_check_branch
      %42 = sbr.rel (0) target = $region13
    $region12: #{lstm_forward_sequence.2} parent=1 // pred_region
      %s44 = ssub.s32 128, 128
      %45 = vsyncadd [#allocation6], %s44
      %s47 = sshll.u32 [#allocation7], 4
      %s48 = int_to_ptr.vmem [resolvable:$true] %s47
      %50 = dma.hbm_to_vmem [thread:$0]  %s2, 128, %s48, [#allocation6]
    $region13: #{lstm_forward_sequence.2} parent=1 // pred_fallthru
      _
    // Predicated region
    $region14: #{lstm_forward_sequence.2} parent=1 // pred_check
      _
    $region15: #{lstm_forward_sequence.2} parent=1 // pred_check_branch
      %52 = sbr.rel (0) target = $region17
    $region16: #{lstm_forward_sequence.2} parent=1 // pred_region
      %s54 = ssub.s32 128, 128
      %55 = vsyncadd [#allocation9], %s54
      %s57 = sshll.u32 [#allocation8], 4
      %s58 = int_to_ptr.vmem [resolvable:$true] %s57
      %60 = dma.hbm_to_vmem [thread:$0]  %s3, 128, %s58, [#allocation9]
    $region17: #{lstm_forward_sequence.2} parent=1 // pred_fallthru
      _
    // Predicated region
    $region18: #{lstm_forward_sequence.2} parent=1 // pred_check
      _
    $region19: #{lstm_forward_sequence.2} parent=1 // pred_check_branch
      %62 = sbr.rel (0) target = $region21
    $region20: #{lstm_forward_sequence.2} parent=1 // pred_region
      %63 = dma.done [#allocation3], 512
    $region21: #{lstm_forward_sequence.2} parent=1 // pred_fallthru
      _
    // Predicated region
    $region22: #{lstm_forward_sequence.2} parent=1 // pred_check
      _
    $region23: #{lstm_forward_sequence.2} parent=1 // pred_check_branch
      %65 = sbr.rel (0) target = $region25
    $region24: #{lstm_forward_sequence.2} parent=1 // pred_region
      %66 = dma.done [#allocation6], 256
    $region25: #{lstm_forward_sequence.2} parent=1 // pred_fallthru
      _
    // Predicated region
    $region26: #{lstm_forward_sequence.2} parent=1 // pred_check
      _
    $region27: #{lstm_forward_sequence.2} parent=1 // pred_check_branch
      %68 = sbr.rel (0) target = $region29
    $region28: #{lstm_forward_sequence.2} parent=1 // pred_region
      %69 = dma.done [#allocation6], 128
    $region29: #{lstm_forward_sequence.2} parent=1 // pred_fallthru
      _
    // Predicated region
    $region30: #{lstm_forward_sequence.2} parent=1 // pred_check
      _
    $region31: #{lstm_forward_sequence.2} parent=1 // pred_check_branch
      %71 = sbr.rel (0) target = $region33
    $region32: #{lstm_forward_sequence.2} parent=1 // pred_region
      %72 = dma.done [#allocation9], 128
    $region33: #{lstm_forward_sequence.2} parent=1 // pred_fallthru
      _
    %p74 = scmp.eq.s32.totalorder 0, 0
    // Predicated region
    $region34: #{lstm_forward_sequence.2} parent=1 // pred_check
      %p75 = pneg %p74
    $region35: #{lstm_forward_sequence.2} parent=1 // pred_check_branch
      %77 = sbr.rel (%p75) target = $region37
    $region36: #{lstm_forward_sequence.2} parent=1 // pred_region
      %v78 = vld [vmem:[#allocation7] sm:$0xff]
      %vm79 = vcmask 261120
      %80 = vst.msk [vmem:[#allocation11] sm:$0xff] %vm79, %v78
      %v81 = vld [vmem:[#allocation8] sm:$0xff]
      %82 = vst.msk [vmem:[#allocation13] sm:$0xff] %vm79, %v81
    $region37: #{lstm_forward_sequence.2} parent=1 // pred_fallthru
      _
    %v83 = vld [vmem:[#allocation5] sm:$0xf]
    %v84 = vld [vmem:[#allocation5 + $0x4] sm:$0xf]
    %v85 = vld [vmem:[#allocation5 + $0x8] sm:$0xf]
    %v86 = vld [vmem:[#allocation5 + $0xc] sm:$0xf]
    %v87 = vld [vmem:[#allocation11] sm:$0xff]
    %v88 = vld [vmem:[#allocation13] sm:$0xff]
    %v89 = vld [vmem:[#allocation2] sm:$0xf]
    %v90 = vunpack.c.l.bf16 %v89
    %v91 = vpack.c.bf16 %v87, %v87
    %v96 = vunpack.c.l.b16 %v83
    %v97 = vunpack.c.l.b16 %v84
    %v98 = vunpack.c.l.b16 %v85
    %v99 = vunpack.c.l.b16 %v86
    %v100 = vpack.c.b16 %v97, %v96
    %v101 = vpack.c.b16 %v99, %v98
    %vm104 = vcmask 261120
    %v106 = vsel %vm104, %v91, 0
    %108 = vmatprep.subr.bf16.mxu0 0
    %109 = vmatpush1.bf16.msra.mxu0 %v100
    %110 = vmatprep.subr.bf16.mxu0 0
    %111 = vmatpush1.bf16.msra.mxu0 %v101
    %112 = vmatprep.subr.bf16.mxu0 0
    %113 = vmatpush1.bf16.msra.mxu0 0
    %114 = vmatprep.subr.bf16.mxu0 0
    %115 = vmatpush1.bf16.msra.mxu0 0
    %116 = vmatprep.subr.bf16.mxu0 0
    %117 = vmatpush1.bf16.msra.mxu0 0
    %118 = vmatprep.subr.bf16.mxu0 0
    %119 = vmatpush1.bf16.msra.mxu0 0
    %120 = vmatprep.subr.bf16.mxu0 0
    %121 = vmatpush1.bf16.msra.mxu0 0
    %122 = vmatprep.subr.bf16.mxu0 0
    %123 = vmatpush1.bf16.msra.mxu0 0
    %124 = vmatprep.subr.bf16.mxu0 0
    %125 = vmatpush1.bf16.msra.mxu0 0
    %126 = vmatprep.subr.bf16.mxu0 0
    %127 = vmatpush1.bf16.msra.mxu0 0
    %128 = vmatprep.subr.bf16.mxu0 0
    %129 = vmatpush1.bf16.msra.mxu0 0
    %130 = vmatprep.subr.bf16.mxu0 0
    %131 = vmatpush1.bf16.msra.mxu0 0
    %132 = vmatprep.subr.bf16.mxu0 0
    %133 = vmatpush1.bf16.msra.mxu0 0
    %134 = vmatprep.subr.bf16.mxu0 0
    %135 = vmatpush1.bf16.msra.mxu0 0
    %136 = vmatprep.subr.bf16.mxu0 0
    %137 = vmatpush1.bf16.msra.mxu0 0
    %138 = vmatprep.subr.bf16.mxu0 0
    %139 = vmatpush1.bf16.msra.mxu0 0
    %140 = vmatprep.mubr.bf16.mxu0 0
    %141 = vmatmul.mubr.bf16.gmra.mrb[0].mxu0 %v106
    %v142 = vpop.f32.mrb[0].mxu0
    %v143 = vadd.f32 0.0, %v142
    %v144 = vpop.f32.mrb[0].mxu0
    %v145 = vpop.f32.mrb[0].mxu0
    %v146 = vpop.f32.mrb[0].mxu0
    %147 = vdwg.mxu0
    %v148 = vadd.f32 %v90, %v143
    %v149 = vxor.u32 %v148, 2147483648
    %v150 = vmul.f32 %v149, 1.442695
    %v151 = vpow.pop %v150
    %v152 = vadd.f32 %v151, 1.0
    %v153 = vrcp.pop %v152
    %v154 = vmul.f32 1.0, %v153
    %v155 = vtanh.pop %v148
    %v156 = vmul.f32 %v154, %v88
    %158 = vrot.lane.b32.xlu0 %v155, 96
    %v159 = vpop.permute.xlu0 %158
    %v161 = vmul.f32 %v154, %v159
    %163 = vrot.lane.b32.xlu0 %v161, 96
    %v164 = vpop.permute.xlu0 %163
    %v166 = vadd.f32 %v156, %v164
    %v167 = vtanh.pop %v166
    %169 = vrot.lane.b32.xlu0 %v167, 96
    %v170 = vpop.permute.xlu0 %169
    %v172 = vmul.f32 %v154, %v170
    %174 = vrot.lane.b32.xlu0 %v172, 32
    %v175 = vpop.permute.xlu0 %174
    %177 = vst.msk [vmem:[#allocation11] sm:$0xff] %vm104, %v175
    %178 = vst.msk [vmem:[#allocation13] sm:$0xff] %vm104, %v166
    %179 = vst.msk [vmem:[#allocation10] sm:$0xff] %vm104, %v175
    %v180 = vld [vmem:[#allocation11] sm:$0xff]
    %v181 = vld [vmem:[#allocation13] sm:$0xff]
    %s182 = scalar_lea.vmem [#allocation2], 4
    %v183 = vld [vmem:[%s182] sm:$0xf]
    %v184 = vunpack.c.l.bf16 %v183
    %v185 = vpack.c.bf16 %v180, %v180
    %v187 = vsel %vm104, %v185, 0
    %189 = vmatprep.subr.bf16.mxu0 0
    %190 = vmatpush1.bf16.msra.mxu0 %v100
    %191 = vmatprep.subr.bf16.mxu0 0
    %192 = vmatpush1.bf16.msra.mxu0 %v101
    %193 = vmatprep.subr.bf16.mxu0 0
    %194 = vmatpush1.bf16.msra.mxu0 0
    %195 = vmatprep.subr.bf16.mxu0 0
    %196 = vmatpush1.bf16.msra.mxu0 0
    %197 = vmatprep.subr.bf16.mxu0 0
    %198 = vmatpush1.bf16.msra.mxu0 0
    %199 = vmatprep.subr.bf16.mxu0 0
    %200 = vmatpush1.bf16.msra.mxu0 0
    %201 = vmatprep.subr.bf16.mxu0 0
    %202 = vmatpush1.bf16.msra.mxu0 0
    %203 = vmatprep.subr.bf16.mxu0 0
    %204 = vmatpush1.bf16.msra.mxu0 0
    %205 = vmatprep.subr.bf16.mxu0 0
    %206 = vmatpush1.bf16.msra.mxu0 0
    %207 = vmatprep.subr.bf16.mxu0 0
    %208 = vmatpush1.bf16.msra.mxu0 0
    %209 = vmatprep.subr.bf16.mxu0 0
    %210 = vmatpush1.bf16.msra.mxu0 0
    %211 = vmatprep.subr.bf16.mxu0 0
    %212 = vmatpush1.bf16.msra.mxu0 0
    %213 = vmatprep.subr.bf16.mxu0 0
    %214 = vmatpush1.bf16.msra.mxu0 0
    %215 = vmatprep.subr.bf16.mxu0 0
    %216 = vmatpush1.bf16.msra.mxu0 0
    %217 = vmatprep.subr.bf16.mxu0 0
    %218 = vmatpush1.bf16.msra.mxu0 0
    %219 = vmatprep.subr.bf16.mxu0 0
    %220 = vmatpush1.bf16.msra.mxu0 0
    %221 = vmatprep.mubr.bf16.mxu0 0
    %222 = vmatmul.mubr.bf16.gmra.mrb[0].mxu0 %v187
    %v223 = vpop.f32.mrb[0].mxu0
    %v224 = vadd.f32 0.0, %v223
    %v225 = vpop.f32.mrb[0].mxu0
    %v226 = vpop.f32.mrb[0].mxu0
    %v227 = vpop.f32.mrb[0].mxu0
    %228 = vdwg.mxu0
    %v229 = vadd.f32 %v184, %v224
    %v230 = vxor.u32 %v229, 2147483648
    %v231 = vmul.f32 %v230, 1.442695
    %v232 = vpow.pop %v231
    %v233 = vadd.f32 %v232, 1.0
    %v234 = vrcp.pop %v233
    %v235 = vmul.f32 1.0, %v234
    %v236 = vtanh.pop %v229
    %v237 = vmul.f32 %v235, %v181
    %239 = vrot.lane.b32.xlu0 %v236, 96
    %v240 = vpop.permute.xlu0 %239
    %v242 = vmul.f32 %v235, %v240
    %244 = vrot.lane.b32.xlu0 %v242, 96
    %v245 = vpop.permute.xlu0 %244
    %v247 = vadd.f32 %v237, %v245
    %v248 = vtanh.pop %v247
    %250 = vrot.lane.b32.xlu0 %v248, 96
    %v251 = vpop.permute.xlu0 %250
    %v253 = vmul.f32 %v235, %v251
    %255 = vrot.lane.b32.xlu0 %v253, 32
    %v256 = vpop.permute.xlu0 %255
    %258 = vst.msk [vmem:[#allocation11] sm:$0xff] %vm104, %v256
    %259 = vst.msk [vmem:[#allocation13] sm:$0xff] %vm104, %v247
    %s260 = scalar_lea.vmem [#allocation10], 8
    %261 = vst.msk [vmem:[%s260] sm:$0xff] %vm104, %v256
    %v262 = vld [vmem:[#allocation11] sm:$0xff]
    %v263 = vld [vmem:[#allocation13] sm:$0xff]
    %s264 = scalar_lea.vmem [#allocation2], 8
    %v265 = vld [vmem:[%s264] sm:$0xf]
    %v266 = vunpack.c.l.bf16 %v265
    %v267 = vpack.c.bf16 %v262, %v262
    %v269 = vsel %vm104, %v267, 0
    %271 = vmatprep.subr.bf16.mxu0 0
    %272 = vmatpush1.bf16.msra.mxu0 %v100
    %273 = vmatprep.subr.bf16.mxu0 0
    %274 = vmatpush1.bf16.msra.mxu0 %v101
    %275 = vmatprep.subr.bf16.mxu0 0
    %276 = vmatpush1.bf16.msra.mxu0 0
    %277 = vmatprep.subr.bf16.mxu0 0
    %278 = vmatpush1.bf16.msra.mxu0 0
    %279 = vmatprep.subr.bf16.mxu0 0
    %280 = vmatpush1.bf16.msra.mxu0 0
    %281 = vmatprep.subr.bf16.mxu0 0
    %282 = vmatpush1.bf16.msra.mxu0 0
    %283 = vmatprep.subr.bf16.mxu0 0
    %284 = vmatpush1.bf16.msra.mxu0 0
    %285 = vmatprep.subr.bf16.mxu0 0
    %286 = vmatpush1.bf16.msra.mxu0 0
    %287 = vmatprep.subr.bf16.mxu0 0
    %288 = vmatpush1.bf16.msra.mxu0 0
    %289 = vmatprep.subr.bf16.mxu0 0
    %290 = vmatpush1.bf16.msra.mxu0 0
    %291 = vmatprep.subr.bf16.mxu0 0
    %292 = vmatpush1.bf16.msra.mxu0 0
    %293 = vmatprep.subr.bf16.mxu0 0
    %294 = vmatpush1.bf16.msra.mxu0 0
    %295 = vmatprep.subr.bf16.mxu0 0
    %296 = vmatpush1.bf16.msra.mxu0 0
    %297 = vmatprep.subr.bf16.mxu0 0
    %298 = vmatpush1.bf16.msra.mxu0 0
    %299 = vmatprep.subr.bf16.mxu0 0
    %300 = vmatpush1.bf16.msra.mxu0 0
    %301 = vmatprep.subr.bf16.mxu0 0
    %302 = vmatpush1.bf16.msra.mxu0 0
    %303 = vmatprep.mubr.bf16.mxu0 0
    %304 = vmatmul.mubr.bf16.gmra.mrb[0].mxu0 %v269
    %v305 = vpop.f32.mrb[0].mxu0
    %v306 = vadd.f32 0.0, %v305
    %v307 = vpop.f32.mrb[0].mxu0
    %v308 = vpop.f32.mrb[0].mxu0
    %v309 = vpop.f32.mrb[0].mxu0
    %310 = vdwg.mxu0
    %v311 = vadd.f32 %v266, %v306
    %v312 = vxor.u32 %v311, 2147483648
    %v313 = vmul.f32 %v312, 1.442695
    %v314 = vpow.pop %v313
    %v315 = vadd.f32 %v314, 1.0
    %v316 = vrcp.pop %v315
    %v317 = vmul.f32 1.0, %v316
    %v318 = vtanh.pop %v311
    %v319 = vmul.f32 %v317, %v263
    %321 = vrot.lane.b32.xlu0 %v318, 96
    %v322 = vpop.permute.xlu0 %321
    %v324 = vmul.f32 %v317, %v322
    %326 = vrot.lane.b32.xlu0 %v324, 96
    %v327 = vpop.permute.xlu0 %326
    %v329 = vadd.f32 %v319, %v327
    %v330 = vtanh.pop %v329
    %332 = vrot.lane.b32.xlu0 %v330, 96
    %v333 = vpop.permute.xlu0 %332
    %v335 = vmul.f32 %v317, %v333
    %337 = vrot.lane.b32.xlu0 %v335, 32
    %v338 = vpop.permute.xlu0 %337
    %340 = vst.msk [vmem:[#allocation11] sm:$0xff] %vm104, %v338
    %341 = vst.msk [vmem:[#allocation13] sm:$0xff] %vm104, %v329
    %s342 = scalar_lea.vmem [#allocation10], 16
    %343 = vst.msk [vmem:[%s342] sm:$0xff] %vm104, %v338
    %v344 = vld [vmem:[#allocation11] sm:$0xff]
    %v345 = vld [vmem:[#allocation13] sm:$0xff]
    %s346 = scalar_lea.vmem [#allocation2], 12
    %v347 = vld [vmem:[%s346] sm:$0xf]
    %v348 = vunpack.c.l.bf16 %v347
    %v349 = vpack.c.bf16 %v344, %v344
    %v351 = vsel %vm104, %v349, 0
    %353 = vmatprep.subr.bf16.mxu0 0
    %354 = vmatpush1.bf16.msra.mxu0 %v100
    %355 = vmatprep.subr.bf16.mxu0 0
    %356 = vmatpush1.bf16.msra.mxu0 %v101
    %357 = vmatprep.subr.bf16.mxu0 0
    %358 = vmatpush1.bf16.msra.mxu0 0
    %359 = vmatprep.subr.bf16.mxu0 0
    %360 = vmatpush1.bf16.msra.mxu0 0
    %361 = vmatprep.subr.bf16.mxu0 0
    %362 = vmatpush1.bf16.msra.mxu0 0
    %363 = vmatprep.subr.bf16.mxu0 0
    %364 = vmatpush1.bf16.msra.mxu0 0
    %365 = vmatprep.subr.bf16.mxu0 0
    %366 = vmatpush1.bf16.msra.mxu0 0
    %367 = vmatprep.subr.bf16.mxu0 0
    %368 = vmatpush1.bf16.msra.mxu0 0
    %369 = vmatprep.subr.bf16.mxu0 0
    %370 = vmatpush1.bf16.msra.mxu0 0
    %371 = vmatprep.subr.bf16.mxu0 0
    %372 = vmatpush1.bf16.msra.mxu0 0
    %373 = vmatprep.subr.bf16.mxu0 0
    %374 = vmatpush1.bf16.msra.mxu0 0
    %375 = vmatprep.subr.bf16.mxu0 0
    %376 = vmatpush1.bf16.msra.mxu0 0
    %377 = vmatprep.subr.bf16.mxu0 0
    %378 = vmatpush1.bf16.msra.mxu0 0
    %379 = vmatprep.subr.bf16.mxu0 0
    %380 = vmatpush1.bf16.msra.mxu0 0
    %381 = vmatprep.subr.bf16.mxu0 0
    %382 = vmatpush1.bf16.msra.mxu0 0
    %383 = vmatprep.subr.bf16.mxu0 0
    %384 = vmatpush1.bf16.msra.mxu0 0
    %385 = vmatprep.mubr.bf16.mxu0 0
    %386 = vmatmul.mubr.bf16.gmra.mrb[0].mxu0 %v351
    %v387 = vpop.f32.mrb[0].mxu0
    %v388 = vadd.f32 0.0, %v387
    %v389 = vpop.f32.mrb[0].mxu0
    %v390 = vpop.f32.mrb[0].mxu0
    %v391 = vpop.f32.mrb[0].mxu0
    %392 = vdwg.mxu0
    %v393 = vadd.f32 %v348, %v388
    %v394 = vxor.u32 %v393, 2147483648
    %v395 = vmul.f32 %v394, 1.442695
    %v396 = vpow.pop %v395
    %v397 = vadd.f32 %v396, 1.0
    %v398 = vrcp.pop %v397
    %v399 = vmul.f32 1.0, %v398
    %v400 = vtanh.pop %v393
    %v401 = vmul.f32 %v399, %v345
    %403 = vrot.lane.b32.xlu0 %v400, 96
    %v404 = vpop.permute.xlu0 %403
    %v406 = vmul.f32 %v399, %v404
    %408 = vrot.lane.b32.xlu0 %v406, 96
    %v409 = vpop.permute.xlu0 %408
    %v411 = vadd.f32 %v401, %v409
    %v412 = vtanh.pop %v411
    %414 = vrot.lane.b32.xlu0 %v412, 96
    %v415 = vpop.permute.xlu0 %414
    %v417 = vmul.f32 %v399, %v415
    %419 = vrot.lane.b32.xlu0 %v417, 32
    %v420 = vpop.permute.xlu0 %419
    %422 = vst.msk [vmem:[#allocation11] sm:$0xff] %vm104, %v420
    %423 = vst.msk [vmem:[#allocation13] sm:$0xff] %vm104, %v411
    %s424 = scalar_lea.vmem [#allocation10], 24
    %425 = vst.msk [vmem:[%s424] sm:$0xff] %vm104, %v420
    %v426 = vld [vmem:[#allocation11] sm:$0xff]
    %v427 = vld [vmem:[#allocation13] sm:$0xff]
    %s428 = scalar_lea.vmem [#allocation2], 16
    %v429 = vld [vmem:[%s428] sm:$0xf]
    %v430 = vunpack.c.l.bf16 %v429
    %v431 = vpack.c.bf16 %v426, %v426
    %v433 = vsel %vm104, %v431, 0
    %435 = vmatprep.subr.bf16.mxu0 0
    %436 = vmatpush1.bf16.msra.mxu0 %v100
    %437 = vmatprep.subr.bf16.mxu0 0
    %438 = vmatpush1.bf16.msra.mxu0 %v101
    %439 = vmatprep.subr.bf16.mxu0 0
    %440 = vmatpush1.bf16.msra.mxu0 0
    %441 = vmatprep.subr.bf16.mxu0 0
    %442 = vmatpush1.bf16.msra.mxu0 0
    %443 = vmatprep.subr.bf16.mxu0 0
    %444 = vmatpush1.bf16.msra.mxu0 0
    %445 = vmatprep.subr.bf16.mxu0 0
    %446 = vmatpush1.bf16.msra.mxu0 0
    %447 = vmatprep.subr.bf16.mxu0 0
    %448 = vmatpush1.bf16.msra.mxu0 0
    %449 = vmatprep.subr.bf16.mxu0 0
    %450 = vmatpush1.bf16.msra.mxu0 0
    %451 = vmatprep.subr.bf16.mxu0 0
    %452 = vmatpush1.bf16.msra.mxu0 0
    %453 = vmatprep.subr.bf16.mxu0 0
    %454 = vmatpush1.bf16.msra.mxu0 0
    %455 = vmatprep.subr.bf16.mxu0 0
    %456 = vmatpush1.bf16.msra.mxu0 0
    %457 = vmatprep.subr.bf16.mxu0 0
    %458 = vmatpush1.bf16.msra.mxu0 0
    %459 = vmatprep.subr.bf16.mxu0 0
    %460 = vmatpush1.bf16.msra.mxu0 0
    %461 = vmatprep.subr.bf16.mxu0 0
    %462 = vmatpush1.bf16.msra.mxu0 0
    %463 = vmatprep.subr.bf16.mxu0 0
    %464 = vmatpush1.bf16.msra.mxu0 0
    %465 = vmatprep.subr.bf16.mxu0 0
    %466 = vmatpush1.bf16.msra.mxu0 0
    %467 = vmatprep.mubr.bf16.mxu0 0
    %468 = vmatmul.mubr.bf16.gmra.mrb[0].mxu0 %v433
    %v469 = vpop.f32.mrb[0].mxu0
    %v470 = vadd.f32 0.0, %v469
    %v471 = vpop.f32.mrb[0].mxu0
    %v472 = vpop.f32.mrb[0].mxu0
    %v473 = vpop.f32.mrb[0].mxu0
    %474 = vdwg.mxu0
    %v475 = vadd.f32 %v430, %v470
    %v476 = vxor.u32 %v475, 2147483648
    %v477 = vmul.f32 %v476, 1.442695
    %v478 = vpow.pop %v477
    %v479 = vadd.f32 %v478, 1.0
    %v480 = vrcp.pop %v479
    %v481 = vmul.f32 1.0, %v480
    %v482 = vtanh.pop %v475
    %v483 = vmul.f32 %v481, %v427
    %485 = vrot.lane.b32.xlu0 %v482, 96
    %v486 = vpop.permute.xlu0 %485
    %v488 = vmul.f32 %v481, %v486
    %490 = vrot.lane.b32.xlu0 %v488, 96
    %v491 = vpop.permute.xlu0 %490
    %v493 = vadd.f32 %v483, %v491
    %v494 = vtanh.pop %v493
    %496 = vrot.lane.b32.xlu0 %v494, 96
    %v497 = vpop.permute.xlu0 %496
    %v499 = vmul.f32 %v481, %v497
    %501 = vrot.lane.b32.xlu0 %v499, 32
    %v502 = vpop.permute.xlu0 %501
    %504 = vst.msk [vmem:[#allocation11] sm:$0xff] %vm104, %v502
    %505 = vst.msk [vmem:[#allocation13] sm:$0xff] %vm104, %v493
    %s506 = scalar_lea.vmem [#allocation10], 32
    %507 = vst.msk [vmem:[%s506] sm:$0xff] %vm104, %v502
    %v508 = vld [vmem:[#allocation11] sm:$0xff]
    %v509 = vld [vmem:[#allocation13] sm:$0xff]
    %s510 = scalar_lea.vmem [#allocation2], 20
    %v511 = vld [vmem:[%s510] sm:$0xf]
    %v512 = vunpack.c.l.bf16 %v511
    %v513 = vpack.c.bf16 %v508, %v508
    %v515 = vsel %vm104, %v513, 0
    %517 = vmatprep.subr.bf16.mxu0 0
    %518 = vmatpush1.bf16.msra.mxu0 %v100
    %519 = vmatprep.subr.bf16.mxu0 0
    %520 = vmatpush1.bf16.msra.mxu0 %v101
    %521 = vmatprep.subr.bf16.mxu0 0
    %522 = vmatpush1.bf16.msra.mxu0 0
    %523 = vmatprep.subr.bf16.mxu0 0
    %524 = vmatpush1.bf16.msra.mxu0 0
    %525 = vmatprep.subr.bf16.mxu0 0
    %526 = vmatpush1.bf16.msra.mxu0 0
    %527 = vmatprep.subr.bf16.mxu0 0
    %528 = vmatpush1.bf16.msra.mxu0 0
    %529 = vmatprep.subr.bf16.mxu0 0
    %530 = vmatpush1.bf16.msra.mxu0 0
    %531 = vmatprep.subr.bf16.mxu0 0
    %532 = vmatpush1.bf16.msra.mxu0 0
    %533 = vmatprep.subr.bf16.mxu0 0
    %534 = vmatpush1.bf16.msra.mxu0 0
    %535 = vmatprep.subr.bf16.mxu0 0
    %536 = vmatpush1.bf16.msra.mxu0 0
    %537 = vmatprep.subr.bf16.mxu0 0
    %538 = vmatpush1.bf16.msra.mxu0 0
    %539 = vmatprep.subr.bf16.mxu0 0
    %540 = vmatpush1.bf16.msra.mxu0 0
    %541 = vmatprep.subr.bf16.mxu0 0
    %542 = vmatpush1.bf16.msra.mxu0 0
    %543 = vmatprep.subr.bf16.mxu0 0
    %544 = vmatpush1.bf16.msra.mxu0 0
    %545 = vmatprep.subr.bf16.mxu0 0
    %546 = vmatpush1.bf16.msra.mxu0 0
    %547 = vmatprep.subr.bf16.mxu0 0
    %548 = vmatpush1.bf16.msra.mxu0 0
    %549 = vmatprep.mubr.bf16.mxu0 0
    %550 = vmatmul.mubr.bf16.gmra.mrb[0].mxu0 %v515
    %v551 = vpop.f32.mrb[0].mxu0
    %v552 = vadd.f32 0.0, %v551
    %v553 = vpop.f32.mrb[0].mxu0
    %v554 = vpop.f32.mrb[0].mxu0
    %v555 = vpop.f32.mrb[0].mxu0
    %556 = vdwg.mxu0
    %v557 = vadd.f32 %v512, %v552
    %v558 = vxor.u32 %v557, 2147483648
    %v559 = vmul.f32 %v558, 1.442695
    %v560 = vpow.pop %v559
    %v561 = vadd.f32 %v560, 1.0
    %v562 = vrcp.pop %v561
    %v563 = vmul.f32 1.0, %v562
    %v564 = vtanh.pop %v557
    %v565 = vmul.f32 %v563, %v509
    %567 = vrot.lane.b32.xlu0 %v564, 96
    %v568 = vpop.permute.xlu0 %567
    %v570 = vmul.f32 %v563, %v568
    %572 = vrot.lane.b32.xlu0 %v570, 96
    %v573 = vpop.permute.xlu0 %572
    %v575 = vadd.f32 %v565, %v573
    %v576 = vtanh.pop %v575
    %578 = vrot.lane.b32.xlu0 %v576, 96
    %v579 = vpop.permute.xlu0 %578
    %v581 = vmul.f32 %v563, %v579
    %583 = vrot.lane.b32.xlu0 %v581, 32
    %v584 = vpop.permute.xlu0 %583
    %586 = vst.msk [vmem:[#allocation11] sm:$0xff] %vm104, %v584
    %587 = vst.msk [vmem:[#allocation13] sm:$0xff] %vm104, %v575
    %s588 = scalar_lea.vmem [#allocation10], 40
    %589 = vst.msk [vmem:[%s588] sm:$0xff] %vm104, %v584
    %v590 = vld [vmem:[#allocation11] sm:$0xff]
    %v591 = vld [vmem:[#allocation13] sm:$0xff]
    %s592 = scalar_lea.vmem [#allocation2], 24
    %v593 = vld [vmem:[%s592] sm:$0xf]
    %v594 = vunpack.c.l.bf16 %v593
    %v595 = vpack.c.bf16 %v590, %v590
    %v597 = vsel %vm104, %v595, 0
    %599 = vmatprep.subr.bf16.mxu0 0
    %600 = vmatpush1.bf16.msra.mxu0 %v100
    %601 = vmatprep.subr.bf16.mxu0 0
    %602 = vmatpush1.bf16.msra.mxu0 %v101
    %603 = vmatprep.subr.bf16.mxu0 0
    %604 = vmatpush1.bf16.msra.mxu0 0
    %605 = vmatprep.subr.bf16.mxu0 0
    %606 = vmatpush1.bf16.msra.mxu0 0
    %607 = vmatprep.subr.bf16.mxu0 0
    %608 = vmatpush1.bf16.msra.mxu0 0
    %609 = vmatprep.subr.bf16.mxu0 0
    %610 = vmatpush1.bf16.msra.mxu0 0
    %611 = vmatprep.subr.bf16.mxu0 0
    %612 = vmatpush1.bf16.msra.mxu0 0
    %613 = vmatprep.subr.bf16.mxu0 0
    %614 = vmatpush1.bf16.msra.mxu0 0
    %615 = vmatprep.subr.bf16.mxu0 0
    %616 = vmatpush1.bf16.msra.mxu0 0
    %617 = vmatprep.subr.bf16.mxu0 0
    %618 = vmatpush1.bf16.msra.mxu0 0
    %619 = vmatprep.subr.bf16.mxu0 0
    %620 = vmatpush1.bf16.msra.mxu0 0
    %621 = vmatprep.subr.bf16.mxu0 0
    %622 = vmatpush1.bf16.msra.mxu0 0
    %623 = vmatprep.subr.bf16.mxu0 0
    %624 = vmatpush1.bf16.msra.mxu0 0
    %625 = vmatprep.subr.bf16.mxu0 0
    %626 = vmatpush1.bf16.msra.mxu0 0
    %627 = vmatprep.subr.bf16.mxu0 0
    %628 = vmatpush1.bf16.msra.mxu0 0
    %629 = vmatprep.subr.bf16.mxu0 0
    %630 = vmatpush1.bf16.msra.mxu0 0
    %631 = vmatprep.mubr.bf16.mxu0 0
    %632 = vmatmul.mubr.bf16.gmra.mrb[0].mxu0 %v597
    %v633 = vpop.f32.mrb[0].mxu0
    %v634 = vadd.f32 0.0, %v633
    %v635 = vpop.f32.mrb[0].mxu0
    %v636 = vpop.f32.mrb[0].mxu0
    %v637 = vpop.f32.mrb[0].mxu0
    %638 = vdwg.mxu0
    %v639 = vadd.f32 %v594, %v634
    %v640 = vxor.u32 %v639, 2147483648
    %v641 = vmul.f32 %v640, 1.442695
    %v642 = vpow.pop %v641
    %v643 = vadd.f32 %v642, 1.0
    %v644 = vrcp.pop %v643
    %v645 = vmul.f32 1.0, %v644
    %v646 = vtanh.pop %v639
    %v647 = vmul.f32 %v645, %v591
    %649 = vrot.lane.b32.xlu0 %v646, 96
    %v650 = vpop.permute.xlu0 %649
    %v652 = vmul.f32 %v645, %v650
    %654 = vrot.lane.b32.xlu0 %v652, 96
    %v655 = vpop.permute.xlu0 %654
    %v657 = vadd.f32 %v647, %v655
    %v658 = vtanh.pop %v657
    %660 = vrot.lane.b32.xlu0 %v658, 96
    %v661 = vpop.permute.xlu0 %660
    %v663 = vmul.f32 %v645, %v661
    %665 = vrot.lane.b32.xlu0 %v663, 32
    %v666 = vpop.permute.xlu0 %665
    %668 = vst.msk [vmem:[#allocation11] sm:$0xff] %vm104, %v666
    %669 = vst.msk [vmem:[#allocation13] sm:$0xff] %vm104, %v657
    %s670 = scalar_lea.vmem [#allocation10], 48
    %671 = vst.msk [vmem:[%s670] sm:$0xff] %vm104, %v666
    %v672 = vld [vmem:[#allocation11] sm:$0xff]
    %v673 = vld [vmem:[#allocation13] sm:$0xff]
    %s674 = scalar_lea.vmem [#allocation2], 28
    %v675 = vld [vmem:[%s674] sm:$0xf]
    %v676 = vunpack.c.l.bf16 %v675
    %v677 = vpack.c.bf16 %v672, %v672
    %v679 = vsel %vm104, %v677, 0
    %681 = vmatprep.subr.bf16.mxu0 0
    %682 = vmatpush1.bf16.msra.mxu0 %v100
    %683 = vmatprep.subr.bf16.mxu0 0
    %684 = vmatpush1.bf16.msra.mxu0 %v101
    %685 = vmatprep.subr.bf16.mxu0 0
    %686 = vmatpush1.bf16.msra.mxu0 0
    %687 = vmatprep.subr.bf16.mxu0 0
    %688 = vmatpush1.bf16.msra.mxu0 0
    %689 = vmatprep.subr.bf16.mxu0 0
    %690 = vmatpush1.bf16.msra.mxu0 0
    %691 = vmatprep.subr.bf16.mxu0 0
    %692 = vmatpush1.bf16.msra.mxu0 0
    %693 = vmatprep.subr.bf16.mxu0 0
    %694 = vmatpush1.bf16.msra.mxu0 0
    %695 = vmatprep.subr.bf16.mxu0 0
    %696 = vmatpush1.bf16.msra.mxu0 0
    %697 = vmatprep.subr.bf16.mxu0 0
    %698 = vmatpush1.bf16.msra.mxu0 0
    %699 = vmatprep.subr.bf16.mxu0 0
    %700 = vmatpush1.bf16.msra.mxu0 0
    %701 = vmatprep.subr.bf16.mxu0 0
    %702 = vmatpush1.bf16.msra.mxu0 0
    %703 = vmatprep.subr.bf16.mxu0 0
    %704 = vmatpush1.bf16.msra.mxu0 0
    %705 = vmatprep.subr.bf16.mxu0 0
    %706 = vmatpush1.bf16.msra.mxu0 0
    %707 = vmatprep.subr.bf16.mxu0 0
    %708 = vmatpush1.bf16.msra.mxu0 0
    %709 = vmatprep.subr.bf16.mxu0 0
    %710 = vmatpush1.bf16.msra.mxu0 0
    %711 = vmatprep.subr.bf16.mxu0 0
    %712 = vmatpush1.bf16.msra.mxu0 0
    %713 = vmatprep.mubr.bf16.mxu0 0
    %714 = vmatmul.mubr.bf16.gmra.mrb[0].mxu0 %v679
    %v715 = vpop.f32.mrb[0].mxu0
    %v716 = vadd.f32 0.0, %v715
    %v717 = vpop.f32.mrb[0].mxu0
    %v718 = vpop.f32.mrb[0].mxu0
    %v719 = vpop.f32.mrb[0].mxu0
    %720 = vdwg.mxu0
    %v721 = vadd.f32 %v676, %v716
    %v722 = vxor.u32 %v721, 2147483648
    %v723 = vmul.f32 %v722, 1.442695
    %v724 = vpow.pop %v723
    %v725 = vadd.f32 %v724, 1.0
    %v726 = vrcp.pop %v725
    %v727 = vmul.f32 1.0, %v726
    %v728 = vtanh.pop %v721
    %v729 = vmul.f32 %v727, %v673
    %731 = vrot.lane.b32.xlu0 %v728, 96
    %v732 = vpop.permute.xlu0 %731
    %v734 = vmul.f32 %v727, %v732
    %736 = vrot.lane.b32.xlu0 %v734, 96
    %v737 = vpop.permute.xlu0 %736
    %v739 = vadd.f32 %v729, %v737
    %v740 = vtanh.pop %v739
    %742 = vrot.lane.b32.xlu0 %v740, 96
    %v743 = vpop.permute.xlu0 %742
    %v745 = vmul.f32 %v727, %v743
    %747 = vrot.lane.b32.xlu0 %v745, 32
    %v748 = vpop.permute.xlu0 %747
    %750 = vst.msk [vmem:[#allocation11] sm:$0xff] %vm104, %v748
    %751 = vst.msk [vmem:[#allocation13] sm:$0xff] %vm104, %v739
    %s752 = scalar_lea.vmem [#allocation10], 56
    %753 = vst.msk [vmem:[%s752] sm:$0xff] %vm104, %v748
    // Predicated region
    $region38: #{lstm_forward_sequence.2} parent=1 // pred_check
      _
    $region39: #{lstm_forward_sequence.2} parent=1 // pred_check_branch
      %755 = sbr.rel (0) target = $region41
    $region40: #{lstm_forward_sequence.2} parent=1 // pred_region
      %s757 = ssub.s32 1024, 1024
      %758 = vsyncadd [#allocation4], %s757
      %s759 = sshll.u32 [#allocation10], 4
      %s760 = int_to_ptr.vmem [resolvable:$true] %s759
      %765 = dma.vmem_to_hbm [thread:$0]  %s760, 1024, %s4, [#allocation4], 128, 128, 8
    $region41: #{lstm_forward_sequence.2} parent=1 // pred_fallthru
      _
    // Predicated region
    $region42: #{lstm_forward_sequence.2} parent=1 // pred_check
      _
    $region43: #{lstm_forward_sequence.2} parent=1 // pred_check_branch
      %767 = sbr.rel (0) target = $region45
    $region44: #{lstm_forward_sequence.2} parent=1 // pred_region
      %s769 = ssub.s32 128, 128
      %770 = vsyncadd [#allocation12], %s769
      %s772 = sshll.u32 [#allocation11], 4
      %s773 = int_to_ptr.vmem [resolvable:$true] %s772
      %775 = dma.vmem_to_hbm [thread:$0]  %s773, 128, %s5, [#allocation12]
    $region45: #{lstm_forward_sequence.2} parent=1 // pred_fallthru
      _
    // Predicated region
    $region46: #{lstm_forward_sequence.2} parent=1 // pred_check
      _
    $region47: #{lstm_forward_sequence.2} parent=1 // pred_check_branch
      %777 = sbr.rel (0) target = $region49
    $region48: #{lstm_forward_sequence.2} parent=1 // pred_region
      %s779 = ssub.s32 128, 128
      %780 = vsyncadd [#allocation12], %s779
      %s782 = sshll.u32 [#allocation13], 4
      %s783 = int_to_ptr.vmem [resolvable:$true] %s782
      %785 = dma.vmem_to_hbm [thread:$0]  %s783, 128, %s6, [#allocation12]
    $region49: #{lstm_forward_sequence.2} parent=1 // pred_fallthru
      _
    // Predicated region
    $region50: #{lstm_forward_sequence.2} parent=1 // pred_check
      _
    $region51: #{lstm_forward_sequence.2} parent=1 // pred_check_branch
      %787 = sbr.rel (0) target = $region53
    $region52: #{lstm_forward_sequence.2} parent=1 // pred_region
      %788 = dma.done [#allocation4], 1024
    $region53: #{lstm_forward_sequence.2} parent=1 // pred_fallthru
      _
    // Predicated region
    $region54: #{lstm_forward_sequence.2} parent=1 // pred_check
      _
    $region55: #{lstm_forward_sequence.2} parent=1 // pred_check_branch
      %790 = sbr.rel (0) target = $region57
    $region56: #{lstm_forward_sequence.2} parent=1 // pred_region
      %791 = dma.done [#allocation12], 128
    $region57: #{lstm_forward_sequence.2} parent=1 // pred_fallthru
      _
    // Predicated region
    $region58: #{lstm_forward_sequence.2} parent=1 // pred_check
      _
    $region59: #{lstm_forward_sequence.2} parent=1 // pred_check_branch
      %793 = sbr.rel (0) target = $region61
    $region60: #{lstm_forward_sequence.2} parent=1 // pred_region
      %794 = dma.done [#allocation12], 128
    $region61: #{lstm_forward_sequence.2} parent=1 // pred_fallthru
      _
    %795 = vsyncpa [#allocation3], 1
    %796 = vsyncpa [#allocation6], 1
    %797 = vsyncpa [#allocation9], 1
    %798 = vsyncpa [#allocation4], 1
    %799 = vsyncpa [#allocation12], 1

</llo_original>
